<compile_context>
chip_gen: v5e
topology: v5e:2x2
jax: 0.10.0
libtpu: 0.0.40
codegen_flags: <defaults>
</compile_context>

<pallas_src>
import functools

import numpy as np
import jax
import jax.numpy as jnp
from jax import lax
from jax.experimental import pallas as pl
from jax.experimental.pallas import tpu as pltpu

NEG_SLOPE = 0.2  # nn.LeakyReLU(negative_slope=0.2)


# ------------------------------ Pallas kernel ------------------------------ #
def _fused_disc_kernel(x_ref, *refs, layer_dims):
    """Runs all 5 conv layers for one batch element entirely in VMEM/vregs.

    x_ref:      (H, W*C0) input, channels folded into the lane dim.
    refs:       [M_1..M_5] Toeplitz weights (Win*Cin, 4*Wout*Cout) bf16,
                [b_1..b_5] bias rows (1, Wout*Cout) f32,
                o_ref      (Hf, Wf*Cf) f32 output.
    layer_dims: tuple of (Hin, Hout, Nout=Wout*Cout) per layer (static).
    """
    n = len(layer_dims)
    m_refs = refs[:n]
    b_refs = refs[n:2 * n]
    o_ref = refs[2 * n]

    a = x_ref[...].astype(jnp.float32)                      # (Hin, Win*Cin)
    for i, (hin, hout, nout) in enumerate(layer_dims):
        # Width + channel direction: one lane-dense bf16 MXU matmul against the
        # Toeplitz-expanded weights, f32 accumulation.
        z = jnp.dot(a.astype(jnp.bfloat16), m_refs[i][...],
                    preferred_element_type=jnp.float32)     # (Hin, 4*Nout)

        # Height direction: stride-2 row gather + sum over kh expressed as four
        # tiny 0/1 selection matmuls (no strided memory access needed).
        ho_i = lax.broadcasted_iota(jnp.int32, (hout, hin), 0)
        h_i = lax.broadcasted_iota(jnp.int32, (hout, hin), 1)
        acc = jnp.zeros((hout, nout), jnp.float32)
        for kh in range(4):
            sel = (h_i + 1 == 2 * ho_i + kh).astype(jnp.float32)  # (Hout, Hin)
            acc = acc + jnp.dot(sel, z[:, kh * nout:(kh + 1) * nout],
                                preferred_element_type=jnp.float32)

        acc = acc + b_refs[i][...]                           # bias (1, Nout)
        if i < n - 1:                                        # LeakyReLU(0.2)
            acc = jnp.where(acc > 0, acc, NEG_SLOPE * acc)
        a = acc                                              # (Hout, Nout)

    o_ref[...] = a.astype(o_ref.dtype)


# -------------------------- Weight preprocessing ---------------------------- #
def _prep_layer(w, b, hin, win, cin):
    """Build the Toeplitz-expanded weight and tiled bias row for one layer.

    w: (Cout, Cin, 4, 4) PyTorch layout, b: (Cout,).
    Returns M (Win*Cin, 4*Wout*Cout) bf16, bias row (1, Wout*Cout) f32,
    kernel dims (Hin, Hout, Wout*Cout) and next-layer (H, W, C).
    """
    cout = w.shape[0]
    assert hin % 2 == 0 and win % 2 == 0 and hin >= 2 and win >= 2
    hout, wout = hin // 2, win // 2

    # sel[wi, wo, kw] = 1  iff  wi == 2*wo + kw - 1   (padding=1 folded in).
    sel = np.zeros((win, wout, 4), np.float32)
    for wo in range(wout):
        for kw in range(4):
            wi = 2 * wo + kw - 1
            if 0 <= wi < win:
                sel[wi, wo, kw] = 1.0

    # M[(wi, cin), (kh, wo, cout)] = sum_kw sel[wi, wo, kw] * w[cout, cin, kh, kw]
    m = jnp.einsum('xoq,uckq->xckou', jnp.asarray(sel), w.astype(jnp.float32))
    m = m.reshape(win * cin, 4 * wout * cout).astype(jnp.bfloat16)

    brow = jnp.tile(b.astype(jnp.float32), wout).reshape(1, wout * cout)
    return m, brow, (hin, hout, wout * cout), (hout, wout, cout)


# ------------------------------ Forward pass -------------------------------- #
@jax.jit
def fc_discriminator(x_nchw, params):
    """Conv->LReLU x4 -> classifier conv.  Input NCHW, output NCHW."""
    B, C0, H, W = x_nchw.shape
    # Fold channels into the lane dim: xf[b, h, w*C0 + c] = x[b, c, h, w].
    xf = jnp.transpose(x_nchw, (0, 2, 3, 1)).reshape(B, H, W * C0)

    ms, brs, dims = [], [], []
    hin, win, cin = H, W, C0
    for (w, b) in params:
        m, brow, d, nxt = _prep_layer(w, b, hin, win, cin)
        ms.append(m)
        brs.append(brow)
        dims.append(d)
        hin, win, cin = nxt
    hf, wf, cf = hin, win, cin  # final output spatial / channels

    kernel = functools.partial(_fused_disc_kernel, layer_dims=tuple(dims))

    in_specs = [pl.BlockSpec((None, H, W * C0), lambda bi: (bi, 0, 0))]
    in_specs += [pl.BlockSpec(m.shape, lambda bi: (0, 0)) for m in ms]
    in_specs += [pl.BlockSpec(r.shape, lambda bi: (0, 0)) for r in brs]

    out = pl.pallas_call(
        kernel,
        out_shape=jax.ShapeDtypeStruct((B, hf, wf * cf), jnp.float32),
        grid_spec=pltpu.PrefetchScalarGridSpec(
            num_scalar_prefetch=0,
            grid=(B,),
            in_specs=in_specs,
            out_specs=pl.BlockSpec((None, hf, wf * cf), lambda bi: (bi, 0, 0)),
        ),
        compiler_params=pltpu.CompilerParams(
            dimension_semantics=("parallel",)),  # batch across v7x TCs
    )(xf, *ms, *brs)

    return jnp.transpose(out.reshape(B, hf, wf, cf), (0, 3, 1, 2))  # -> NCHW


# ------------------------------- Model setup -------------------------------- #
def init_params(key, num_classes, ndf):
    """Deterministic init matching PyTorch Conv2d default (uniform +-1/sqrt(fan_in))."""
    layer_dims = [
        (num_classes, ndf),
        (ndf, ndf * 2),
        (ndf * 2, ndf * 4),
        (ndf * 4, ndf * 8),
        (ndf * 8, 1),
    ]
    params = []
    for i, (cin, cout) in enumerate(layer_dims):
        kw_key, kb_key = jax.random.split(jax.random.fold_in(key, i))
        fan_in = cin * 4 * 4
        bound = 1.0 / (fan_in ** 0.5)
        w = jax.random.uniform(kw_key, (cout, cin, 4, 4), jnp.float32, -bound, bound)
        b = jax.random.uniform(kb_key, (cout,), jnp.float32, -bound, bound)
        params.append((w, b))
    return params


def reference_forward(x, params):
    """Plain-JAX f32 reference (matches the PyTorch module)."""
    y = x
    n = len(params)
    for i, (w, b) in enumerate(params):
        y = lax.conv_general_dilated(
            y, w, window_strides=(2, 2), padding=((1, 1), (1, 1)),
            dimension_numbers=('NCHW', 'OIHW', 'NCHW'),
            precision=lax.Precision.HIGHEST)
        y = y + b.reshape(1, -1, 1, 1)
        if i < n - 1:
            y = jnp.where(y > 0, y, NEG_SLOPE * y)
    return y


# ----------------------------------- main ----------------------------------- #
if __name__ == "__main__":
    key = jax.random.PRNGKey(0)
    num_classes, ndf = 4, 8
    B, H, W = 2, 32, 32  # 5 stride-2 convs: 32 -> 16 -> 8 -> 4 -> 2 -> 1

    x_key, p_key = jax.random.split(key)
    x = jax.random.normal(x_key, (B, num_classes, H, W), jnp.float32)
    params = init_params(p_key, num_classes, ndf)

    out = jax.block_until_ready(fc_discriminator(x, params))
    assert out.shape == (B, 1, 1, 1), out.shape

    # Loose sanity check against an f32 reference (kernel uses bf16 operands
    # with f32 accumulation, so a small relative error is expected).
    ref = jax.block_until_ready(reference_forward(x, params))
    err = float(jnp.max(jnp.abs(out - ref)))
    scale = float(jnp.max(jnp.abs(ref))) + 1e-6
    assert err <= 1e-2 + 0.1 * scale, (err, scale)

    print("KERNEL_OK")
</pallas_src>

<mosaic_0001>
module attributes {stable_mosaic.version = 11 : i64} {
  func.func @_fused_disc_kernel(%arg0: i32, %arg1: memref<1x32x128xf32, #tpu.memory_space<vmem>>, %arg2: memref<128x512xbf16, #tpu.memory_space<vmem>>, %arg3: memref<128x512xbf16, #tpu.memory_space<vmem>>, %arg4: memref<128x512xbf16, #tpu.memory_space<vmem>>, %arg5: memref<128x512xbf16, #tpu.memory_space<vmem>>, %arg6: memref<128x4xbf16, #tpu.memory_space<vmem>>, %arg7: memref<1x128xf32, #tpu.memory_space<vmem>>, %arg8: memref<1x128xf32, #tpu.memory_space<vmem>>, %arg9: memref<1x128xf32, #tpu.memory_space<vmem>>, %arg10: memref<1x128xf32, #tpu.memory_space<vmem>>, %arg11: memref<1x1xf32, #tpu.memory_space<vmem>>, %arg12: memref<1x1x1xf32, #tpu.memory_space<vmem>>) attributes {dimension_semantics = [#tpu.dimension_semantics<parallel>], iteration_bounds = array<i64: 2>, scalar_prefetch = 0 : i64, scratch_operands = 0 : i64, tpu.core_type = #tpu.core_type<tc>, window_params = [{transform_indices = @transform_0, window_bounds = array<i64: 1, 32, 128>}, {pipeline_mode = #tpu.pipeline_mode<synchronous>, transform_indices = @transform_1, window_bounds = array<i64: 128, 512>}, {pipeline_mode = #tpu.pipeline_mode<synchronous>, transform_indices = @transform_2, window_bounds = array<i64: 128, 512>}, {pipeline_mode = #tpu.pipeline_mode<synchronous>, transform_indices = @transform_3, window_bounds = array<i64: 128, 512>}, {pipeline_mode = #tpu.pipeline_mode<synchronous>, transform_indices = @transform_4, window_bounds = array<i64: 128, 512>}, {pipeline_mode = #tpu.pipeline_mode<synchronous>, transform_indices = @transform_5, window_bounds = array<i64: 128, 4>}, {pipeline_mode = #tpu.pipeline_mode<synchronous>, transform_indices = @transform_6, window_bounds = array<i64: 1, 128>}, {pipeline_mode = #tpu.pipeline_mode<synchronous>, transform_indices = @transform_7, window_bounds = array<i64: 1, 128>}, {pipeline_mode = #tpu.pipeline_mode<synchronous>, transform_indices = @transform_8, window_bounds = array<i64: 1, 128>}, {pipeline_mode = #tpu.pipeline_mode<synchronous>, transform_indices = @transform_9, window_bounds = array<i64: 1, 128>}, {pipeline_mode = #tpu.pipeline_mode<synchronous>, transform_indices = @transform_10, window_bounds = array<i64: 1, 1>}, {transform_indices = @transform_11, window_bounds = array<i64: 1, 1, 1>}]} {
    %c0 = arith.constant 0 : index
    %c0_0 = arith.constant 0 : index
    %c0_1 = arith.constant 0 : index
    %0 = vector.load %arg1[%c0, %c0_0, %c0_1] : memref<1x32x128xf32, #tpu.memory_space<vmem>>, vector<1x32x128xf32>
    %1 = vector.shape_cast %0 : vector<1x32x128xf32> to vector<32x128xf32>
    %2 = arith.truncf %1 : vector<32x128xf32> to vector<32x128xbf16>
    %c0_2 = arith.constant 0 : index
    %c0_3 = arith.constant 0 : index
    %3 = vector.load %arg2[%c0_2, %c0_3] : memref<128x512xbf16, #tpu.memory_space<vmem>>, vector<128x512xbf16>
    %cst = arith.constant dense<0.000000e+00> : vector<32x512xf32>
    %4 = tpu.matmul %2, %3, %cst {dimension_numbers = #tpu.dot_dimension_numbers<[1], [0], [0], [1], [0, 0, 1, 1], [], []>} : vector<32x128xbf16>, vector<128x512xbf16>, vector<32x512xf32> -> vector<32x512xf32>
    %5 = tpu.iota {dimensions = array<i32: 0>} : vector<16x32xi32>
    %6 = tpu.iota {dimensions = array<i32: 1>} : vector<16x32xi32>
    %cst_4 = arith.constant 0.000000e+00 : f32
    %7 = vector.broadcast %cst_4 : f32 to vector<16x128xf32>
    %c1_i32 = arith.constant 1 : i32
    %8 = vector.broadcast %c1_i32 : i32 to vector<16x32xi32>
    %9 = arith.addi %6, %8 : vector<16x32xi32>
    %c2_i32 = arith.constant 2 : i32
    %10 = vector.broadcast %c2_i32 : i32 to vector<16x32xi32>
    %11 = arith.muli %10, %5 : vector<16x32xi32>
    %c0_i32 = arith.constant 0 : i32
    %12 = vector.broadcast %c0_i32 : i32 to vector<16x32xi32>
    %13 = arith.addi %11, %12 : vector<16x32xi32>
    %14 = arith.cmpi eq, %9, %13 : vector<16x32xi32>
    %15 = arith.extui %14 : vector<16x32xi1> to vector<16x32xi32>
    %16 = arith.sitofp %15 : vector<16x32xi32> to vector<16x32xf32>
    %17 = vector.extract_strided_slice %4 {offsets = [0, 0], sizes = [32, 128], strides = [1, 1]} : vector<32x512xf32> to vector<32x128xf32>
    %cst_5 = arith.constant dense<0.000000e+00> : vector<16x128xf32>
    %18 = tpu.matmul %16, %17, %cst_5 {dimension_numbers = #tpu.dot_dimension_numbers<[1], [0], [0], [1], [0, 0, 1, 1], [], []>} : vector<16x32xf32>, vector<32x128xf32>, vector<16x128xf32> -> vector<16x128xf32>
    %19 = arith.addf %7, %18 : vector<16x128xf32>
    %c1_i32_6 = arith.constant 1 : i32
    %20 = vector.broadcast %c1_i32_6 : i32 to vector<16x32xi32>
    %21 = arith.addi %6, %20 : vector<16x32xi32>
    %c2_i32_7 = arith.constant 2 : i32
    %22 = vector.broadcast %c2_i32_7 : i32 to vector<16x32xi32>
    %23 = arith.muli %22, %5 : vector<16x32xi32>
    %c1_i32_8 = arith.constant 1 : i32
    %24 = vector.broadcast %c1_i32_8 : i32 to vector<16x32xi32>
    %25 = arith.addi %23, %24 : vector<16x32xi32>
    %26 = arith.cmpi eq, %21, %25 : vector<16x32xi32>
    %27 = arith.extui %26 : vector<16x32xi1> to vector<16x32xi32>
    %28 = arith.sitofp %27 : vector<16x32xi32> to vector<16x32xf32>
    %29 = vector.extract_strided_slice %4 {offsets = [0, 128], sizes = [32, 128], strides = [1, 1]} : vector<32x512xf32> to vector<32x128xf32>
    %cst_9 = arith.constant dense<0.000000e+00> : vector<16x128xf32>
    %30 = tpu.matmul %28, %29, %cst_9 {dimension_numbers = #tpu.dot_dimension_numbers<[1], [0], [0], [1], [0, 0, 1, 1], [], []>} : vector<16x32xf32>, vector<32x128xf32>, vector<16x128xf32> -> vector<16x128xf32>
    %31 = arith.addf %19, %30 : vector<16x128xf32>
    %c1_i32_10 = arith.constant 1 : i32
    %32 = vector.broadcast %c1_i32_10 : i32 to vector<16x32xi32>
    %33 = arith.addi %6, %32 : vector<16x32xi32>
    %c2_i32_11 = arith.constant 2 : i32
    %34 = vector.broadcast %c2_i32_11 : i32 to vector<16x32xi32>
    %35 = arith.muli %34, %5 : vector<16x32xi32>
    %c2_i32_12 = arith.constant 2 : i32
    %36 = vector.broadcast %c2_i32_12 : i32 to vector<16x32xi32>
    %37 = arith.addi %35, %36 : vector<16x32xi32>
    %38 = arith.cmpi eq, %33, %37 : vector<16x32xi32>
    %39 = arith.extui %38 : vector<16x32xi1> to vector<16x32xi32>
    %40 = arith.sitofp %39 : vector<16x32xi32> to vector<16x32xf32>
    %41 = vector.extract_strided_slice %4 {offsets = [0, 256], sizes = [32, 128], strides = [1, 1]} : vector<32x512xf32> to vector<32x128xf32>
    %cst_13 = arith.constant dense<0.000000e+00> : vector<16x128xf32>
    %42 = tpu.matmul %40, %41, %cst_13 {dimension_numbers = #tpu.dot_dimension_numbers<[1], [0], [0], [1], [0, 0, 1, 1], [], []>} : vector<16x32xf32>, vector<32x128xf32>, vector<16x128xf32> -> vector<16x128xf32>
    %43 = arith.addf %31, %42 : vector<16x128xf32>
    %c1_i32_14 = arith.constant 1 : i32
    %44 = vector.broadcast %c1_i32_14 : i32 to vector<16x32xi32>
    %45 = arith.addi %6, %44 : vector<16x32xi32>
    %c2_i32_15 = arith.constant 2 : i32
    %46 = vector.broadcast %c2_i32_15 : i32 to vector<16x32xi32>
    %47 = arith.muli %46, %5 : vector<16x32xi32>
    %c3_i32 = arith.constant 3 : i32
    %48 = vector.broadcast %c3_i32 : i32 to vector<16x32xi32>
    %49 = arith.addi %47, %48 : vector<16x32xi32>
    %50 = arith.cmpi eq, %45, %49 : vector<16x32xi32>
    %51 = arith.extui %50 : vector<16x32xi1> to vector<16x32xi32>
    %52 = arith.sitofp %51 : vector<16x32xi32> to vector<16x32xf32>
    %53 = vector.extract_strided_slice %4 {offsets = [0, 384], sizes = [32, 128], strides = [1, 1]} : vector<32x512xf32> to vector<32x128xf32>
    %cst_16 = arith.constant dense<0.000000e+00> : vector<16x128xf32>
    %54 = tpu.matmul %52, %53, %cst_16 {dimension_numbers = #tpu.dot_dimension_numbers<[1], [0], [0], [1], [0, 0, 1, 1], [], []>} : vector<16x32xf32>, vector<32x128xf32>, vector<16x128xf32> -> vector<16x128xf32>
    %55 = arith.addf %43, %54 : vector<16x128xf32>
    %c0_17 = arith.constant 0 : index
    %c0_18 = arith.constant 0 : index
    %56 = vector.load %arg7[%c0_17, %c0_18] : memref<1x128xf32, #tpu.memory_space<vmem>>, vector<1x128xf32>
    %57 = vector.broadcast %56 : vector<1x128xf32> to vector<16x128xf32>
    %58 = arith.addf %55, %57 : vector<16x128xf32>
    %cst_19 = arith.constant 0.000000e+00 : f32
    %59 = vector.broadcast %cst_19 : f32 to vector<16x128xf32>
    %60 = arith.cmpf ogt, %58, %59 : vector<16x128xf32>
    %cst_20 = arith.constant 2.000000e-01 : f32
    %61 = vector.broadcast %cst_20 : f32 to vector<16x128xf32>
    %62 = arith.mulf %61, %58 : vector<16x128xf32>
    %63 = arith.select %60, %58, %62 : vector<16x128xi1>, vector<16x128xf32>
    %64 = arith.truncf %63 : vector<16x128xf32> to vector<16x128xbf16>
    %c0_21 = arith.constant 0 : index
    %c0_22 = arith.constant 0 : index
    %65 = vector.load %arg3[%c0_21, %c0_22] : memref<128x512xbf16, #tpu.memory_space<vmem>>, vector<128x512xbf16>
    %cst_23 = arith.constant dense<0.000000e+00> : vector<16x512xf32>
    %66 = tpu.matmul %64, %65, %cst_23 {dimension_numbers = #tpu.dot_dimension_numbers<[1], [0], [0], [1], [0, 0, 1, 1], [], []>} : vector<16x128xbf16>, vector<128x512xbf16>, vector<16x512xf32> -> vector<16x512xf32>
    %67 = tpu.iota {dimensions = array<i32: 0>} : vector<8x16xi32>
    %68 = tpu.iota {dimensions = array<i32: 1>} : vector<8x16xi32>
    %cst_24 = arith.constant 0.000000e+00 : f32
    %69 = vector.broadcast %cst_24 : f32 to vector<8x128xf32>
    %c1_i32_25 = arith.constant 1 : i32
    %70 = vector.broadcast %c1_i32_25 : i32 to vector<8x16xi32>
    %71 = arith.addi %68, %70 : vector<8x16xi32>
    %c2_i32_26 = arith.constant 2 : i32
    %72 = vector.broadcast %c2_i32_26 : i32 to vector<8x16xi32>
    %73 = arith.muli %72, %67 : vector<8x16xi32>
    %c0_i32_27 = arith.constant 0 : i32
    %74 = vector.broadcast %c0_i32_27 : i32 to vector<8x16xi32>
    %75 = arith.addi %73, %74 : vector<8x16xi32>
    %76 = arith.cmpi eq, %71, %75 : vector<8x16xi32>
    %77 = arith.extui %76 : vector<8x16xi1> to vector<8x16xi32>
    %78 = arith.sitofp %77 : vector<8x16xi32> to vector<8x16xf32>
    %79 = vector.extract_strided_slice %66 {offsets = [0, 0], sizes = [16, 128], strides = [1, 1]} : vector<16x512xf32> to vector<16x128xf32>
    %cst_28 = arith.constant dense<0.000000e+00> : vector<8x128xf32>
    %80 = tpu.matmul %78, %79, %cst_28 {dimension_numbers = #tpu.dot_dimension_numbers<[1], [0], [0], [1], [0, 0, 1, 1], [], []>} : vector<8x16xf32>, vector<16x128xf32>, vector<8x128xf32> -> vector<8x128xf32>
    %81 = arith.addf %69, %80 : vector<8x128xf32>
    %c1_i32_29 = arith.constant 1 : i32
    %82 = vector.broadcast %c1_i32_29 : i32 to vector<8x16xi32>
    %83 = arith.addi %68, %82 : vector<8x16xi32>
    %c2_i32_30 = arith.constant 2 : i32
    %84 = vector.broadcast %c2_i32_30 : i32 to vector<8x16xi32>
    %85 = arith.muli %84, %67 : vector<8x16xi32>
    %c1_i32_31 = arith.constant 1 : i32
    %86 = vector.broadcast %c1_i32_31 : i32 to vector<8x16xi32>
    %87 = arith.addi %85, %86 : vector<8x16xi32>
    %88 = arith.cmpi eq, %83, %87 : vector<8x16xi32>
    %89 = arith.extui %88 : vector<8x16xi1> to vector<8x16xi32>
    %90 = arith.sitofp %89 : vector<8x16xi32> to vector<8x16xf32>
    %91 = vector.extract_strided_slice %66 {offsets = [0, 128], sizes = [16, 128], strides = [1, 1]} : vector<16x512xf32> to vector<16x128xf32>
    %cst_32 = arith.constant dense<0.000000e+00> : vector<8x128xf32>
    %92 = tpu.matmul %90, %91, %cst_32 {dimension_numbers = #tpu.dot_dimension_numbers<[1], [0], [0], [1], [0, 0, 1, 1], [], []>} : vector<8x16xf32>, vector<16x128xf32>, vector<8x128xf32> -> vector<8x128xf32>
    %93 = arith.addf %81, %92 : vector<8x128xf32>
    %c1_i32_33 = arith.constant 1 : i32
    %94 = vector.broadcast %c1_i32_33 : i32 to vector<8x16xi32>
    %95 = arith.addi %68, %94 : vector<8x16xi32>
    %c2_i32_34 = arith.constant 2 : i32
    %96 = vector.broadcast %c2_i32_34 : i32 to vector<8x16xi32>
    %97 = arith.muli %96, %67 : vector<8x16xi32>
    %c2_i32_35 = arith.constant 2 : i32
    %98 = vector.broadcast %c2_i32_35 : i32 to vector<8x16xi32>
    %99 = arith.addi %97, %98 : vector<8x16xi32>
    %100 = arith.cmpi eq, %95, %99 : vector<8x16xi32>
    %101 = arith.extui %100 : vector<8x16xi1> to vector<8x16xi32>
    %102 = arith.sitofp %101 : vector<8x16xi32> to vector<8x16xf32>
    %103 = vector.extract_strided_slice %66 {offsets = [0, 256], sizes = [16, 128], strides = [1, 1]} : vector<16x512xf32> to vector<16x128xf32>
    %cst_36 = arith.constant dense<0.000000e+00> : vector<8x128xf32>
    %104 = tpu.matmul %102, %103, %cst_36 {dimension_numbers = #tpu.dot_dimension_numbers<[1], [0], [0], [1], [0, 0, 1, 1], [], []>} : vector<8x16xf32>, vector<16x128xf32>, vector<8x128xf32> -> vector<8x128xf32>
    %105 = arith.addf %93, %104 : vector<8x128xf32>
    %c1_i32_37 = arith.constant 1 : i32
    %106 = vector.broadcast %c1_i32_37 : i32 to vector<8x16xi32>
    %107 = arith.addi %68, %106 : vector<8x16xi32>
    %c2_i32_38 = arith.constant 2 : i32
    %108 = vector.broadcast %c2_i32_38 : i32 to vector<8x16xi32>
    %109 = arith.muli %108, %67 : vector<8x16xi32>
    %c3_i32_39 = arith.constant 3 : i32
    %110 = vector.broadcast %c3_i32_39 : i32 to vector<8x16xi32>
    %111 = arith.addi %109, %110 : vector<8x16xi32>
    %112 = arith.cmpi eq, %107, %111 : vector<8x16xi32>
    %113 = arith.extui %112 : vector<8x16xi1> to vector<8x16xi32>
    %114 = arith.sitofp %113 : vector<8x16xi32> to vector<8x16xf32>
    %115 = vector.extract_strided_slice %66 {offsets = [0, 384], sizes = [16, 128], strides = [1, 1]} : vector<16x512xf32> to vector<16x128xf32>
    %cst_40 = arith.constant dense<0.000000e+00> : vector<8x128xf32>
    %116 = tpu.matmul %114, %115, %cst_40 {dimension_numbers = #tpu.dot_dimension_numbers<[1], [0], [0], [1], [0, 0, 1, 1], [], []>} : vector<8x16xf32>, vector<16x128xf32>, vector<8x128xf32> -> vector<8x128xf32>
    %117 = arith.addf %105, %116 : vector<8x128xf32>
    %c0_41 = arith.constant 0 : index
    %c0_42 = arith.constant 0 : index
    %118 = vector.load %arg8[%c0_41, %c0_42] : memref<1x128xf32, #tpu.memory_space<vmem>>, vector<1x128xf32>
    %119 = vector.broadcast %118 : vector<1x128xf32> to vector<8x128xf32>
    %120 = arith.addf %117, %119 : vector<8x128xf32>
    %cst_43 = arith.constant 0.000000e+00 : f32
    %121 = vector.broadcast %cst_43 : f32 to vector<8x128xf32>
    %122 = arith.cmpf ogt, %120, %121 : vector<8x128xf32>
    %cst_44 = arith.constant 2.000000e-01 : f32
    %123 = vector.broadcast %cst_44 : f32 to vector<8x128xf32>
    %124 = arith.mulf %123, %120 : vector<8x128xf32>
    %125 = arith.select %122, %120, %124 : vector<8x128xi1>, vector<8x128xf32>
    %126 = arith.truncf %125 : vector<8x128xf32> to vector<8x128xbf16>
    %c0_45 = arith.constant 0 : index
    %c0_46 = arith.constant 0 : index
    %127 = vector.load %arg4[%c0_45, %c0_46] : memref<128x512xbf16, #tpu.memory_space<vmem>>, vector<128x512xbf16>
    %cst_47 = arith.constant dense<0.000000e+00> : vector<8x512xf32>
    %128 = tpu.matmul %126, %127, %cst_47 {dimension_numbers = #tpu.dot_dimension_numbers<[1], [0], [0], [1], [0, 0, 1, 1], [], []>} : vector<8x128xbf16>, vector<128x512xbf16>, vector<8x512xf32> -> vector<8x512xf32>
    %129 = tpu.iota {dimensions = array<i32: 0>} : vector<4x8xi32>
    %130 = tpu.iota {dimensions = array<i32: 1>} : vector<4x8xi32>
    %cst_48 = arith.constant 0.000000e+00 : f32
    %131 = vector.broadcast %cst_48 : f32 to vector<4x128xf32>
    %c1_i32_49 = arith.constant 1 : i32
    %132 = vector.broadcast %c1_i32_49 : i32 to vector<4x8xi32>
    %133 = arith.addi %130, %132 : vector<4x8xi32>
    %c2_i32_50 = arith.constant 2 : i32
    %134 = vector.broadcast %c2_i32_50 : i32 to vector<4x8xi32>
    %135 = arith.muli %134, %129 : vector<4x8xi32>
    %c0_i32_51 = arith.constant 0 : i32
    %136 = vector.broadcast %c0_i32_51 : i32 to vector<4x8xi32>
    %137 = arith.addi %135, %136 : vector<4x8xi32>
    %138 = arith.cmpi eq, %133, %137 : vector<4x8xi32>
    %139 = arith.extui %138 : vector<4x8xi1> to vector<4x8xi32>
    %140 = arith.sitofp %139 : vector<4x8xi32> to vector<4x8xf32>
    %141 = vector.extract_strided_slice %128 {offsets = [0, 0], sizes = [8, 128], strides = [1, 1]} : vector<8x512xf32> to vector<8x128xf32>
    %cst_52 = arith.constant dense<0.000000e+00> : vector<4x128xf32>
    %142 = tpu.matmul %140, %141, %cst_52 {dimension_numbers = #tpu.dot_dimension_numbers<[1], [0], [0], [1], [0, 0, 1, 1], [], []>} : vector<4x8xf32>, vector<8x128xf32>, vector<4x128xf32> -> vector<4x128xf32>
    %143 = arith.addf %131, %142 : vector<4x128xf32>
    %c1_i32_53 = arith.constant 1 : i32
    %144 = vector.broadcast %c1_i32_53 : i32 to vector<4x8xi32>
    %145 = arith.addi %130, %144 : vector<4x8xi32>
    %c2_i32_54 = arith.constant 2 : i32
    %146 = vector.broadcast %c2_i32_54 : i32 to vector<4x8xi32>
    %147 = arith.muli %146, %129 : vector<4x8xi32>
    %c1_i32_55 = arith.constant 1 : i32
    %148 = vector.broadcast %c1_i32_55 : i32 to vector<4x8xi32>
    %149 = arith.addi %147, %148 : vector<4x8xi32>
    %150 = arith.cmpi eq, %145, %149 : vector<4x8xi32>
    %151 = arith.extui %150 : vector<4x8xi1> to vector<4x8xi32>
    %152 = arith.sitofp %151 : vector<4x8xi32> to vector<4x8xf32>
    %153 = vector.extract_strided_slice %128 {offsets = [0, 128], sizes = [8, 128], strides = [1, 1]} : vector<8x512xf32> to vector<8x128xf32>
    %cst_56 = arith.constant dense<0.000000e+00> : vector<4x128xf32>
    %154 = tpu.matmul %152, %153, %cst_56 {dimension_numbers = #tpu.dot_dimension_numbers<[1], [0], [0], [1], [0, 0, 1, 1], [], []>} : vector<4x8xf32>, vector<8x128xf32>, vector<4x128xf32> -> vector<4x128xf32>
    %155 = arith.addf %143, %154 : vector<4x128xf32>
    %c1_i32_57 = arith.constant 1 : i32
    %156 = vector.broadcast %c1_i32_57 : i32 to vector<4x8xi32>
    %157 = arith.addi %130, %156 : vector<4x8xi32>
    %c2_i32_58 = arith.constant 2 : i32
    %158 = vector.broadcast %c2_i32_58 : i32 to vector<4x8xi32>
    %159 = arith.muli %158, %129 : vector<4x8xi32>
    %c2_i32_59 = arith.constant 2 : i32
    %160 = vector.broadcast %c2_i32_59 : i32 to vector<4x8xi32>
    %161 = arith.addi %159, %160 : vector<4x8xi32>
    %162 = arith.cmpi eq, %157, %161 : vector<4x8xi32>
    %163 = arith.extui %162 : vector<4x8xi1> to vector<4x8xi32>
    %164 = arith.sitofp %163 : vector<4x8xi32> to vector<4x8xf32>
    %165 = vector.extract_strided_slice %128 {offsets = [0, 256], sizes = [8, 128], strides = [1, 1]} : vector<8x512xf32> to vector<8x128xf32>
    %cst_60 = arith.constant dense<0.000000e+00> : vector<4x128xf32>
    %166 = tpu.matmul %164, %165, %cst_60 {dimension_numbers = #tpu.dot_dimension_numbers<[1], [0], [0], [1], [0, 0, 1, 1], [], []>} : vector<4x8xf32>, vector<8x128xf32>, vector<4x128xf32> -> vector<4x128xf32>
    %167 = arith.addf %155, %166 : vector<4x128xf32>
    %c1_i32_61 = arith.constant 1 : i32
    %168 = vector.broadcast %c1_i32_61 : i32 to vector<4x8xi32>
    %169 = arith.addi %130, %168 : vector<4x8xi32>
    %c2_i32_62 = arith.constant 2 : i32
    %170 = vector.broadcast %c2_i32_62 : i32 to vector<4x8xi32>
    %171 = arith.muli %170, %129 : vector<4x8xi32>
    %c3_i32_63 = arith.constant 3 : i32
    %172 = vector.broadcast %c3_i32_63 : i32 to vector<4x8xi32>
    %173 = arith.addi %171, %172 : vector<4x8xi32>
    %174 = arith.cmpi eq, %169, %173 : vector<4x8xi32>
    %175 = arith.extui %174 : vector<4x8xi1> to vector<4x8xi32>
    %176 = arith.sitofp %175 : vector<4x8xi32> to vector<4x8xf32>
    %177 = vector.extract_strided_slice %128 {offsets = [0, 384], sizes = [8, 128], strides = [1, 1]} : vector<8x512xf32> to vector<8x128xf32>
    %cst_64 = arith.constant dense<0.000000e+00> : vector<4x128xf32>
    %178 = tpu.matmul %176, %177, %cst_64 {dimension_numbers = #tpu.dot_dimension_numbers<[1], [0], [0], [1], [0, 0, 1, 1], [], []>} : vector<4x8xf32>, vector<8x128xf32>, vector<4x128xf32> -> vector<4x128xf32>
    %179 = arith.addf %167, %178 : vector<4x128xf32>
    %c0_65 = arith.constant 0 : index
    %c0_66 = arith.constant 0 : index
    %180 = vector.load %arg9[%c0_65, %c0_66] : memref<1x128xf32, #tpu.memory_space<vmem>>, vector<1x128xf32>
    %181 = vector.broadcast %180 : vector<1x128xf32> to vector<4x128xf32>
    %182 = arith.addf %179, %181 : vector<4x128xf32>
    %cst_67 = arith.constant 0.000000e+00 : f32
    %183 = vector.broadcast %cst_67 : f32 to vector<4x128xf32>
    %184 = arith.cmpf ogt, %182, %183 : vector<4x128xf32>
    %cst_68 = arith.constant 2.000000e-01 : f32
    %185 = vector.broadcast %cst_68 : f32 to vector<4x128xf32>
    %186 = arith.mulf %185, %182 : vector<4x128xf32>
    %187 = arith.select %184, %182, %186 : vector<4x128xi1>, vector<4x128xf32>
    %188 = arith.truncf %187 : vector<4x128xf32> to vector<4x128xbf16>
    %c0_69 = arith.constant 0 : index
    %c0_70 = arith.constant 0 : index
    %189 = vector.load %arg5[%c0_69, %c0_70] : memref<128x512xbf16, #tpu.memory_space<vmem>>, vector<128x512xbf16>
    %cst_71 = arith.constant dense<0.000000e+00> : vector<4x512xf32>
    %190 = tpu.matmul %188, %189, %cst_71 {dimension_numbers = #tpu.dot_dimension_numbers<[1], [0], [0], [1], [0, 0, 1, 1], [], []>} : vector<4x128xbf16>, vector<128x512xbf16>, vector<4x512xf32> -> vector<4x512xf32>
    %191 = tpu.iota {dimensions = array<i32: 0>} : vector<2x4xi32>
    %192 = tpu.iota {dimensions = array<i32: 1>} : vector<2x4xi32>
    %cst_72 = arith.constant 0.000000e+00 : f32
    %193 = vector.broadcast %cst_72 : f32 to vector<2x128xf32>
    %c1_i32_73 = arith.constant 1 : i32
    %194 = vector.broadcast %c1_i32_73 : i32 to vector<2x4xi32>
    %195 = arith.addi %192, %194 : vector<2x4xi32>
    %c2_i32_74 = arith.constant 2 : i32
    %196 = vector.broadcast %c2_i32_74 : i32 to vector<2x4xi32>
    %197 = arith.muli %196, %191 : vector<2x4xi32>
    %c0_i32_75 = arith.constant 0 : i32
    %198 = vector.broadcast %c0_i32_75 : i32 to vector<2x4xi32>
    %199 = arith.addi %197, %198 : vector<2x4xi32>
    %200 = arith.cmpi eq, %195, %199 : vector<2x4xi32>
    %201 = arith.extui %200 : vector<2x4xi1> to vector<2x4xi32>
    %202 = arith.sitofp %201 : vector<2x4xi32> to vector<2x4xf32>
    %203 = vector.extract_strided_slice %190 {offsets = [0, 0], sizes = [4, 128], strides = [1, 1]} : vector<4x512xf32> to vector<4x128xf32>
    %cst_76 = arith.constant dense<0.000000e+00> : vector<2x128xf32>
    %204 = tpu.matmul %202, %203, %cst_76 {dimension_numbers = #tpu.dot_dimension_numbers<[1], [0], [0], [1], [0, 0, 1, 1], [], []>} : vector<2x4xf32>, vector<4x128xf32>, vector<2x128xf32> -> vector<2x128xf32>
    %205 = arith.addf %193, %204 : vector<2x128xf32>
    %c1_i32_77 = arith.constant 1 : i32
    %206 = vector.broadcast %c1_i32_77 : i32 to vector<2x4xi32>
    %207 = arith.addi %192, %206 : vector<2x4xi32>
    %c2_i32_78 = arith.constant 2 : i32
    %208 = vector.broadcast %c2_i32_78 : i32 to vector<2x4xi32>
    %209 = arith.muli %208, %191 : vector<2x4xi32>
    %c1_i32_79 = arith.constant 1 : i32
    %210 = vector.broadcast %c1_i32_79 : i32 to vector<2x4xi32>
    %211 = arith.addi %209, %210 : vector<2x4xi32>
    %212 = arith.cmpi eq, %207, %211 : vector<2x4xi32>
    %213 = arith.extui %212 : vector<2x4xi1> to vector<2x4xi32>
    %214 = arith.sitofp %213 : vector<2x4xi32> to vector<2x4xf32>
    %215 = vector.extract_strided_slice %190 {offsets = [0, 128], sizes = [4, 128], strides = [1, 1]} : vector<4x512xf32> to vector<4x128xf32>
    %cst_80 = arith.constant dense<0.000000e+00> : vector<2x128xf32>
    %216 = tpu.matmul %214, %215, %cst_80 {dimension_numbers = #tpu.dot_dimension_numbers<[1], [0], [0], [1], [0, 0, 1, 1], [], []>} : vector<2x4xf32>, vector<4x128xf32>, vector<2x128xf32> -> vector<2x128xf32>
    %217 = arith.addf %205, %216 : vector<2x128xf32>
    %c1_i32_81 = arith.constant 1 : i32
    %218 = vector.broadcast %c1_i32_81 : i32 to vector<2x4xi32>
    %219 = arith.addi %192, %218 : vector<2x4xi32>
    %c2_i32_82 = arith.constant 2 : i32
    %220 = vector.broadcast %c2_i32_82 : i32 to vector<2x4xi32>
    %221 = arith.muli %220, %191 : vector<2x4xi32>
    %c2_i32_83 = arith.constant 2 : i32
    %222 = vector.broadcast %c2_i32_83 : i32 to vector<2x4xi32>
    %223 = arith.addi %221, %222 : vector<2x4xi32>
    %224 = arith.cmpi eq, %219, %223 : vector<2x4xi32>
    %225 = arith.extui %224 : vector<2x4xi1> to vector<2x4xi32>
    %226 = arith.sitofp %225 : vector<2x4xi32> to vector<2x4xf32>
    %227 = vector.extract_strided_slice %190 {offsets = [0, 256], sizes = [4, 128], strides = [1, 1]} : vector<4x512xf32> to vector<4x128xf32>
    %cst_84 = arith.constant dense<0.000000e+00> : vector<2x128xf32>
    %228 = tpu.matmul %226, %227, %cst_84 {dimension_numbers = #tpu.dot_dimension_numbers<[1], [0], [0], [1], [0, 0, 1, 1], [], []>} : vector<2x4xf32>, vector<4x128xf32>, vector<2x128xf32> -> vector<2x128xf32>
    %229 = arith.addf %217, %228 : vector<2x128xf32>
    %c1_i32_85 = arith.constant 1 : i32
    %230 = vector.broadcast %c1_i32_85 : i32 to vector<2x4xi32>
    %231 = arith.addi %192, %230 : vector<2x4xi32>
    %c2_i32_86 = arith.constant 2 : i32
    %232 = vector.broadcast %c2_i32_86 : i32 to vector<2x4xi32>
    %233 = arith.muli %232, %191 : vector<2x4xi32>
    %c3_i32_87 = arith.constant 3 : i32
    %234 = vector.broadcast %c3_i32_87 : i32 to vector<2x4xi32>
    %235 = arith.addi %233, %234 : vector<2x4xi32>
    %236 = arith.cmpi eq, %231, %235 : vector<2x4xi32>
    %237 = arith.extui %236 : vector<2x4xi1> to vector<2x4xi32>
    %238 = arith.sitofp %237 : vector<2x4xi32> to vector<2x4xf32>
    %239 = vector.extract_strided_slice %190 {offsets = [0, 384], sizes = [4, 128], strides = [1, 1]} : vector<4x512xf32> to vector<4x128xf32>
    %cst_88 = arith.constant dense<0.000000e+00> : vector<2x128xf32>
    %240 = tpu.matmul %238, %239, %cst_88 {dimension_numbers = #tpu.dot_dimension_numbers<[1], [0], [0], [1], [0, 0, 1, 1], [], []>} : vector<2x4xf32>, vector<4x128xf32>, vector<2x128xf32> -> vector<2x128xf32>
    %241 = arith.addf %229, %240 : vector<2x128xf32>
    %c0_89 = arith.constant 0 : index
    %c0_90 = arith.constant 0 : index
    %242 = vector.load %arg10[%c0_89, %c0_90] : memref<1x128xf32, #tpu.memory_space<vmem>>, vector<1x128xf32>
    %243 = vector.broadcast %242 : vector<1x128xf32> to vector<2x128xf32>
    %244 = arith.addf %241, %243 : vector<2x128xf32>
    %cst_91 = arith.constant 0.000000e+00 : f32
    %245 = vector.broadcast %cst_91 : f32 to vector<2x128xf32>
    %246 = arith.cmpf ogt, %244, %245 : vector<2x128xf32>
    %cst_92 = arith.constant 2.000000e-01 : f32
    %247 = vector.broadcast %cst_92 : f32 to vector<2x128xf32>
    %248 = arith.mulf %247, %244 : vector<2x128xf32>
    %249 = arith.select %246, %244, %248 : vector<2x128xi1>, vector<2x128xf32>
    %250 = arith.truncf %249 : vector<2x128xf32> to vector<2x128xbf16>
    %c0_93 = arith.constant 0 : index
    %c0_94 = arith.constant 0 : index
    %251 = vector.load %arg6[%c0_93, %c0_94] : memref<128x4xbf16, #tpu.memory_space<vmem>>, vector<128x4xbf16>
    %cst_95 = arith.constant dense<0.000000e+00> : vector<2x4xf32>
    %252 = tpu.matmul %250, %251, %cst_95 {dimension_numbers = #tpu.dot_dimension_numbers<[1], [0], [0], [1], [0, 0, 1, 1], [], []>} : vector<2x128xbf16>, vector<128x4xbf16>, vector<2x4xf32> -> vector<2x4xf32>
    %253 = tpu.iota {dimensions = array<i32: 0>} : vector<1x2xi32>
    %254 = tpu.iota {dimensions = array<i32: 1>} : vector<1x2xi32>
    %cst_96 = arith.constant 0.000000e+00 : f32
    %255 = vector.broadcast %cst_96 : f32 to vector<1x1xf32>
    %c1_i32_97 = arith.constant 1 : i32
    %256 = vector.broadcast %c1_i32_97 : i32 to vector<1x2xi32>
    %257 = arith.addi %254, %256 : vector<1x2xi32>
    %c2_i32_98 = arith.constant 2 : i32
    %258 = vector.broadcast %c2_i32_98 : i32 to vector<1x2xi32>
    %259 = arith.muli %258, %253 : vector<1x2xi32>
    %c0_i32_99 = arith.constant 0 : i32
    %260 = vector.broadcast %c0_i32_99 : i32 to vector<1x2xi32>
    %261 = arith.addi %259, %260 : vector<1x2xi32>
    %262 = arith.cmpi eq, %257, %261 : vector<1x2xi32>
    %263 = arith.extui %262 : vector<1x2xi1> to vector<1x2xi32>
    %264 = arith.sitofp %263 : vector<1x2xi32> to vector<1x2xf32>
    %265 = vector.extract_strided_slice %252 {offsets = [0, 0], sizes = [2, 1], strides = [1, 1]} : vector<2x4xf32> to vector<2x1xf32>
    %cst_100 = arith.constant dense<0.000000e+00> : vector<1x1xf32>
    %266 = tpu.matmul %264, %265, %cst_100 {dimension_numbers = #tpu.dot_dimension_numbers<[1], [0], [0], [1], [0, 0, 1, 1], [], []>} : vector<1x2xf32>, vector<2x1xf32>, vector<1x1xf32> -> vector<1x1xf32>
    %267 = arith.addf %255, %266 : vector<1x1xf32>
    %c1_i32_101 = arith.constant 1 : i32
    %268 = vector.broadcast %c1_i32_101 : i32 to vector<1x2xi32>
    %269 = arith.addi %254, %268 : vector<1x2xi32>
    %c2_i32_102 = arith.constant 2 : i32
    %270 = vector.broadcast %c2_i32_102 : i32 to vector<1x2xi32>
    %271 = arith.muli %270, %253 : vector<1x2xi32>
    %c1_i32_103 = arith.constant 1 : i32
    %272 = vector.broadcast %c1_i32_103 : i32 to vector<1x2xi32>
    %273 = arith.addi %271, %272 : vector<1x2xi32>
    %274 = arith.cmpi eq, %269, %273 : vector<1x2xi32>
    %275 = arith.extui %274 : vector<1x2xi1> to vector<1x2xi32>
    %276 = arith.sitofp %275 : vector<1x2xi32> to vector<1x2xf32>
    %277 = vector.extract_strided_slice %252 {offsets = [0, 1], sizes = [2, 1], strides = [1, 1]} : vector<2x4xf32> to vector<2x1xf32>
    %cst_104 = arith.constant dense<0.000000e+00> : vector<1x1xf32>
    %278 = tpu.matmul %276, %277, %cst_104 {dimension_numbers = #tpu.dot_dimension_numbers<[1], [0], [0], [1], [0, 0, 1, 1], [], []>} : vector<1x2xf32>, vector<2x1xf32>, vector<1x1xf32> -> vector<1x1xf32>
    %279 = arith.addf %267, %278 : vector<1x1xf32>
    %c1_i32_105 = arith.constant 1 : i32
    %280 = vector.broadcast %c1_i32_105 : i32 to vector<1x2xi32>
    %281 = arith.addi %254, %280 : vector<1x2xi32>
    %c2_i32_106 = arith.constant 2 : i32
    %282 = vector.broadcast %c2_i32_106 : i32 to vector<1x2xi32>
    %283 = arith.muli %282, %253 : vector<1x2xi32>
    %c2_i32_107 = arith.constant 2 : i32
    %284 = vector.broadcast %c2_i32_107 : i32 to vector<1x2xi32>
    %285 = arith.addi %283, %284 : vector<1x2xi32>
    %286 = arith.cmpi eq, %281, %285 : vector<1x2xi32>
    %287 = arith.extui %286 : vector<1x2xi1> to vector<1x2xi32>
    %288 = arith.sitofp %287 : vector<1x2xi32> to vector<1x2xf32>
    %289 = vector.extract_strided_slice %252 {offsets = [0, 2], sizes = [2, 1], strides = [1, 1]} : vector<2x4xf32> to vector<2x1xf32>
    %cst_108 = arith.constant dense<0.000000e+00> : vector<1x1xf32>
    %290 = tpu.matmul %288, %289, %cst_108 {dimension_numbers = #tpu.dot_dimension_numbers<[1], [0], [0], [1], [0, 0, 1, 1], [], []>} : vector<1x2xf32>, vector<2x1xf32>, vector<1x1xf32> -> vector<1x1xf32>
    %291 = arith.addf %279, %290 : vector<1x1xf32>
    %c1_i32_109 = arith.constant 1 : i32
    %292 = vector.broadcast %c1_i32_109 : i32 to vector<1x2xi32>
    %293 = arith.addi %254, %292 : vector<1x2xi32>
    %c2_i32_110 = arith.constant 2 : i32
    %294 = vector.broadcast %c2_i32_110 : i32 to vector<1x2xi32>
    %295 = arith.muli %294, %253 : vector<1x2xi32>
    %c3_i32_111 = arith.constant 3 : i32
    %296 = vector.broadcast %c3_i32_111 : i32 to vector<1x2xi32>
    %297 = arith.addi %295, %296 : vector<1x2xi32>
    %298 = arith.cmpi eq, %293, %297 : vector<1x2xi32>
    %299 = arith.extui %298 : vector<1x2xi1> to vector<1x2xi32>
    %300 = arith.sitofp %299 : vector<1x2xi32> to vector<1x2xf32>
    %301 = vector.extract_strided_slice %252 {offsets = [0, 3], sizes = [2, 1], strides = [1, 1]} : vector<2x4xf32> to vector<2x1xf32>
    %cst_112 = arith.constant dense<0.000000e+00> : vector<1x1xf32>
    %302 = tpu.matmul %300, %301, %cst_112 {dimension_numbers = #tpu.dot_dimension_numbers<[1], [0], [0], [1], [0, 0, 1, 1], [], []>} : vector<1x2xf32>, vector<2x1xf32>, vector<1x1xf32> -> vector<1x1xf32>
    %303 = arith.addf %291, %302 : vector<1x1xf32>
    %c0_113 = arith.constant 0 : index
    %c0_114 = arith.constant 0 : index
    %304 = vector.load %arg11[%c0_113, %c0_114] : memref<1x1xf32, #tpu.memory_space<vmem>>, vector<1x1xf32>
    %305 = arith.addf %303, %304 : vector<1x1xf32>
    %c0_115 = arith.constant 0 : index
    %c0_116 = arith.constant 0 : index
    %c0_117 = arith.constant 0 : index
    %306 = vector.load %arg12[%c0_115, %c0_116, %c0_117] : memref<1x1x1xf32, #tpu.memory_space<vmem>>, vector<1x1x1xf32>
    %307 = vector.shape_cast %306 : vector<1x1x1xf32> to vector<1x1xf32>
    %308 = vector.shape_cast %305 : vector<1x1xf32> to vector<1x1x1xf32>
    tpu.vector_store %arg12[%c0_115, %c0_116, %c0_117], %308 {strides = array<i32>} : memref<1x1x1xf32, #tpu.memory_space<vmem>>, vector<1x1x1xf32>,
    return
  }
  func.func @transform_0(%arg0: i32) -> (i32, i32, i32) {
    %c0_i32 = arith.constant 0 : i32
    %c0_i32_0 = arith.constant 0 : i32
    %c0_i32_1 = arith.constant 0 : i32
    return %arg0, %c0_i32, %c0_i32_0 : i32, i32, i32
  }
  func.func @transform_1(%arg0: i32) -> (i32, i32) {
    %c0_i32 = arith.constant 0 : i32
    %c0_i32_0 = arith.constant 0 : i32
    %c0_i32_1 = arith.constant 0 : i32
    return %c0_i32, %c0_i32_0 : i32, i32
  }
  func.func @transform_2(%arg0: i32) -> (i32, i32) {
    %c0_i32 = arith.constant 0 : i32
    %c0_i32_0 = arith.constant 0 : i32
    %c0_i32_1 = arith.constant 0 : i32
    return %c0_i32, %c0_i32_0 : i32, i32
  }
  func.func @transform_3(%arg0: i32) -> (i32, i32) {
    %c0_i32 = arith.constant 0 : i32
    %c0_i32_0 = arith.constant 0 : i32
    %c0_i32_1 = arith.constant 0 : i32
    return %c0_i32, %c0_i32_0 : i32, i32
  }
  func.func @transform_4(%arg0: i32) -> (i32, i32) {
    %c0_i32 = arith.constant 0 : i32
    %c0_i32_0 = arith.constant 0 : i32
    %c0_i32_1 = arith.constant 0 : i32
    return %c0_i32, %c0_i32_0 : i32, i32
  }
  func.func @transform_5(%arg0: i32) -> (i32, i32) {
    %c0_i32 = arith.constant 0 : i32
    %c0_i32_0 = arith.constant 0 : i32
    %c0_i32_1 = arith.constant 0 : i32
    return %c0_i32, %c0_i32_0 : i32, i32
  }
  func.func @transform_6(%arg0: i32) -> (i32, i32) {
    %c0_i32 = arith.constant 0 : i32
    %c0_i32_0 = arith.constant 0 : i32
    %c0_i32_1 = arith.constant 0 : i32
    return %c0_i32, %c0_i32_0 : i32, i32
  }
  func.func @transform_7(%arg0: i32) -> (i32, i32) {
    %c0_i32 = arith.constant 0 : i32
    %c0_i32_0 = arith.constant 0 : i32
    %c0_i32_1 = arith.constant 0 : i32
    return %c0_i32, %c0_i32_0 : i32, i32
  }
  func.func @transform_8(%arg0: i32) -> (i32, i32) {
    %c0_i32 = arith.constant 0 : i32
    %c0_i32_0 = arith.constant 0 : i32
    %c0_i32_1 = arith.constant 0 : i32
    return %c0_i32, %c0_i32_0 : i32, i32
  }
  func.func @transform_9(%arg0: i32) -> (i32, i32) {
    %c0_i32 = arith.constant 0 : i32
    %c0_i32_0 = arith.constant 0 : i32
    %c0_i32_1 = arith.constant 0 : i32
    return %c0_i32, %c0_i32_0 : i32, i32
  }
  func.func @transform_10(%arg0: i32) -> (i32, i32) {
    %c0_i32 = arith.constant 0 : i32
    %c0_i32_0 = arith.constant 0 : i32
    %c0_i32_1 = arith.constant 0 : i32
    return %c0_i32, %c0_i32_0 : i32, i32
  }
  func.func @transform_11(%arg0: i32) -> (i32, i32, i32) {
    %c0_i32 = arith.constant 0 : i32
    %c0_i32_0 = arith.constant 0 : i32
    %c0_i32_1 = arith.constant 0 : i32
    return %arg0, %c0_i32, %c0_i32_0 : i32, i32, i32
  }
}

</mosaic_0001>

<llo_original>
// kernel: tile.24
$region0: #{tile.24}
  #allocation0 [shape = 's32[1]{0}', space=sflag, size = 0x4, scoped, tag = 'scoped memory for tile.24']
  %s0 = inlined_call_operand.vmem [shape: f32[8], index: 0, kind: input, shape index: {}]
  %s1 = inlined_call_operand.vmem [shape: f32[16,8], index: 1, kind: output, shape index: {}]
  // Predicated region
  $region2: #{tile.24} parent=0 // pred_check
    _
  $region3: #{tile.24} parent=0 // pred_check_branch
    %3 = sbr.rel (0) target = $region5
  $region4: #{tile.24} parent=0 // pred_region
    _
  $region5: #{tile.24} parent=0 // pred_fallthru
    _
  %v4 = vld [vmem:[%s0] ss:$0 sm:$0xff]
  %5 = vst [vmem:[%s1] sm:$0xff] %v4
  %s6 = scalar_lea.vmem %s1, 8
  %7 = vst [vmem:[%s6] sm:$0xff] %v4

// kernel: tile.25
$region0: #{tile.25}
  %s0 = inlined_call_operand.vmem [shape: f32[16,8], index: 0, kind: input, shape index: {}]
  %s1 = inlined_call_operand.vmem [shape: f32[1,128], index: 1, kind: output, shape index: {}]
  $region1: #{tile.25} parent=0
    #allocation0 [shape = 'u8[4096]{0}', space=vmem, size = 0x1000, scoped, tag = 'scoped mem for output reshape']
    %v2 = vld [vmem:[%s0] sm:$0x1]
    %vm3 = vcmask 64512
    %4 = vst.msk [vmem:[#allocation0] sm:$0x1] %vm3, %v2
    %s5 = scalar_lea.vmem %s0, 15
    %v6 = vld [vmem:[%s5] sm:$0x1]
    %7 = vrot.lane.b32.xlu0 %v6, 120
    %v8 = vpop.permute.xlu0 %7
    %vm9 = vcmask 1048512
    %10 = vst.msk [vmem:[#allocation0] sm:$0x1] %vm9, %v8
    %s11 = scalar_lea.vmem %s0, 14
    %v12 = vld [vmem:[%s11] sm:$0x1]
    %13 = vrot.lane.b32.xlu0 %v12, 112
    %v14 = vpop.permute.xlu0 %13
    %vm15 = vcmask 982912
    %16 = vst.msk [vmem:[#allocation0] sm:$0x1] %vm15, %v14
    %s17 = scalar_lea.vmem %s0, 13
    %v18 = vld [vmem:[%s17] sm:$0x1]
    %19 = vrot.lane.b32.xlu0 %v18, 104
    %v20 = vpop.permute.xlu0 %19
    %vm21 = vcmask 917312
    %22 = vst.msk [vmem:[#allocation0] sm:$0x1] %vm21, %v20
    %s23 = scalar_lea.vmem %s0, 12
    %v24 = vld [vmem:[%s23] sm:$0x1]
    %25 = vrot.lane.b32.xlu0 %v24, 96
    %v26 = vpop.permute.xlu0 %25
    %vm27 = vcmask 851712
    %28 = vst.msk [vmem:[#allocation0] sm:$0x1] %vm27, %v26
    %s29 = scalar_lea.vmem %s0, 11
    %v30 = vld [vmem:[%s29] sm:$0x1]
    %31 = vrot.lane.b32.xlu0 %v30, 88
    %v32 = vpop.permute.xlu0 %31
    %vm33 = vcmask 786112
    %34 = vst.msk [vmem:[#allocation0] sm:$0x1] %vm33, %v32
    %s35 = scalar_lea.vmem %s0, 10
    %v36 = vld [vmem:[%s35] sm:$0x1]
    %37 = vrot.lane.b32.xlu0 %v36, 80
    %v38 = vpop.permute.xlu0 %37
    %vm39 = vcmask 720512
    %40 = vst.msk [vmem:[#allocation0] sm:$0x1] %vm39, %v38
    %s41 = scalar_lea.vmem %s0, 9
    %v42 = vld [vmem:[%s41] sm:$0x1]
    %43 = vrot.lane.b32.xlu0 %v42, 72
    %v44 = vpop.permute.xlu0 %43
    %vm45 = vcmask 654912
    %46 = vst.msk [vmem:[#allocation0] sm:$0x1] %vm45, %v44
    %s47 = scalar_lea.vmem %s0, 8
    %v48 = vld [vmem:[%s47] sm:$0x1]
    %49 = vrot.lane.b32.xlu0 %v48, 64
    %v50 = vpop.permute.xlu0 %49
    %vm51 = vcmask 589312
    %52 = vst.msk [vmem:[#allocation0] sm:$0x1] %vm51, %v50
    %s53 = scalar_lea.vmem %s0, 7
    %v54 = vld [vmem:[%s53] sm:$0x1]
    %55 = vrot.lane.b32.xlu0 %v54, 56
    %v56 = vpop.permute.xlu0 %55
    %vm57 = vcmask 523712
    %58 = vst.msk [vmem:[#allocation0] sm:$0x1] %vm57, %v56
    %s59 = scalar_lea.vmem %s0, 6
    %v60 = vld [vmem:[%s59] sm:$0x1]
    %61 = vrot.lane.b32.xlu0 %v60, 48
    %v62 = vpop.permute.xlu0 %61
    %vm63 = vcmask 458112
    %64 = vst.msk [vmem:[#allocation0] sm:$0x1] %vm63, %v62
    %s65 = scalar_lea.vmem %s0, 5
    %v66 = vld [vmem:[%s65] sm:$0x1]
    %67 = vrot.lane.b32.xlu0 %v66, 40
    %v68 = vpop.permute.xlu0 %67
    %vm69 = vcmask 392512
    %70 = vst.msk [vmem:[#allocation0] sm:$0x1] %vm69, %v68
    %s71 = scalar_lea.vmem %s0, 4
    %v72 = vld [vmem:[%s71] sm:$0x1]
    %73 = vrot.lane.b32.xlu0 %v72, 32
    %v74 = vpop.permute.xlu0 %73
    %vm75 = vcmask 326912
    %76 = vst.msk [vmem:[#allocation0] sm:$0x1] %vm75, %v74
    %s77 = scalar_lea.vmem %s0, 3
    %v78 = vld [vmem:[%s77] sm:$0x1]
    %79 = vrot.lane.b32.xlu0 %v78, 24
    %v80 = vpop.permute.xlu0 %79
    %vm81 = vcmask 261312
    %82 = vst.msk [vmem:[#allocation0] sm:$0x1] %vm81, %v80
    %s83 = scalar_lea.vmem %s0, 2
    %v84 = vld [vmem:[%s83] sm:$0x1]
    %85 = vrot.lane.b32.xlu0 %v84, 16
    %v86 = vpop.permute.xlu0 %85
    %vm87 = vcmask 195712
    %88 = vst.msk [vmem:[#allocation0] sm:$0x1] %vm87, %v86
    %s89 = scalar_lea.vmem %s0, 1
    %v90 = vld [vmem:[%s89] sm:$0x1]
    %91 = vrot.lane.b32.xlu0 %v90, 8
    %v92 = vpop.permute.xlu0 %91
    %vm93 = vcmask 130112
    %94 = vst.msk [vmem:[#allocation0] sm:$0x1] %vm93, %v92
    %s96 = ssub.s32 2, 1
    %v97 = vld [vmem:[#allocation0] sm:%s96]
    %s99 = ssub.s32 2, 1
    %100 = vst [vmem:[%s1] sm:%s99] %v97

// kernel: tile.29
$region0: #{tile.29}
  #allocation0 [shape = 's32[1]{0}', space=sflag, size = 0x4, scoped, tag = 'scoped memory for tile.29']
  %s0 = inlined_call_operand.vmem [shape: f32[16], index: 0, kind: input, shape index: {}]
  %s1 = inlined_call_operand.vmem [shape: f32[8,16], index: 1, kind: output, shape index: {}]
  // Predicated region
  $region2: #{tile.29} parent=0 // pred_check
    _
  $region3: #{tile.29} parent=0 // pred_check_branch
    %3 = sbr.rel (0) target = $region5
  $region4: #{tile.29} parent=0 // pred_region
    _
  $region5: #{tile.29} parent=0 // pred_fallthru
    _
  %v4 = vld [vmem:[%s0] ss:$0 sm:$0xff]
  %5 = vst [vmem:[%s1] sm:$0xff] %v4

// kernel: tile.30
$region0: #{tile.30}
  %s0 = inlined_call_operand.vmem [shape: f32[8,16], index: 0, kind: input, shape index: {}]
  %s1 = inlined_call_operand.vmem [shape: f32[1,128], index: 1, kind: output, shape index: {}]
  $region1: #{tile.30} parent=0
    #allocation0 [shape = 'u8[4096]{0}', space=vmem, size = 0x1000, scoped, tag = 'scoped mem for output reshape']
    %v2 = vld [vmem:[%s0] sm:$0x1]
    %vm3 = vcmask 130048
    %4 = vst.msk [vmem:[#allocation0] sm:$0x1] %vm3, %v2
    %s5 = scalar_lea.vmem %s0, 7
    %v6 = vld [vmem:[%s5] sm:$0x1]
    %7 = vrot.lane.b32.xlu0 %v6, 112
    %v8 = vpop.permute.xlu0 %7
    %vm9 = vcmask 1048448
    %10 = vst.msk [vmem:[#allocation0] sm:$0x1] %vm9, %v8
    %s11 = scalar_lea.vmem %s0, 6
    %v12 = vld [vmem:[%s11] sm:$0x1]
    %13 = vrot.lane.b32.xlu0 %v12, 96
    %v14 = vpop.permute.xlu0 %13
    %vm15 = vcmask 917248
    %16 = vst.msk [vmem:[#allocation0] sm:$0x1] %vm15, %v14
    %s17 = scalar_lea.vmem %s0, 5
    %v18 = vld [vmem:[%s17] sm:$0x1]
    %19 = vrot.lane.b32.xlu0 %v18, 80
    %v20 = vpop.permute.xlu0 %19
    %vm21 = vcmask 786048
    %22 = vst.msk [vmem:[#allocation0] sm:$0x1] %vm21, %v20
    %s23 = scalar_lea.vmem %s0, 4
    %v24 = vld [vmem:[%s23] sm:$0x1]
    %25 = vrot.lane.b32.xlu0 %v24, 64
    %v26 = vpop.permute.xlu0 %25
    %vm27 = vcmask 654848
    %28 = vst.msk [vmem:[#allocation0] sm:$0x1] %vm27, %v26
    %s29 = scalar_lea.vmem %s0, 3
    %v30 = vld [vmem:[%s29] sm:$0x1]
    %31 = vrot.lane.b32.xlu0 %v30, 48
    %v32 = vpop.permute.xlu0 %31
    %vm33 = vcmask 523648
    %34 = vst.msk [vmem:[#allocation0] sm:$0x1] %vm33, %v32
    %s35 = scalar_lea.vmem %s0, 2
    %v36 = vld [vmem:[%s35] sm:$0x1]
    %37 = vrot.lane.b32.xlu0 %v36, 32
    %v38 = vpop.permute.xlu0 %37
    %vm39 = vcmask 392448
    %40 = vst.msk [vmem:[#allocation0] sm:$0x1] %vm39, %v38
    %s41 = scalar_lea.vmem %s0, 1
    %v42 = vld [vmem:[%s41] sm:$0x1]
    %43 = vrot.lane.b32.xlu0 %v42, 16
    %v44 = vpop.permute.xlu0 %43
    %vm45 = vcmask 261248
    %46 = vst.msk [vmem:[#allocation0] sm:$0x1] %vm45, %v44
    %s48 = ssub.s32 2, 1
    %v49 = vld [vmem:[#allocation0] sm:%s48]
    %s51 = ssub.s32 2, 1
    %52 = vst [vmem:[%s1] sm:%s51] %v49

// kernel: tile.34
$region0: #{tile.34}
  #allocation0 [shape = 's32[1]{0}', space=sflag, size = 0x4, scoped, tag = 'scoped memory for tile.34']
  %s0 = inlined_call_operand.vmem [shape: f32[32], index: 0, kind: input, shape index: {}]
  %s1 = inlined_call_operand.vmem [shape: f32[4,32], index: 1, kind: output, shape index: {}]
  // Predicated region
  $region2: #{tile.34} parent=0 // pred_check
    _
  $region3: #{tile.34} parent=0 // pred_check_branch
    %3 = sbr.rel (0) target = $region5
  $region4: #{tile.34} parent=0 // pred_region
    _
  $region5: #{tile.34} parent=0 // pred_fallthru
    _
  %v4 = vld [vmem:[%s0] ss:$0 sm:$0xff]
  %5 = vst [vmem:[%s1] sm:$0xf] %v4

// kernel: tile.35
$region0: #{tile.35}
  %s0 = inlined_call_operand.vmem [shape: f32[4,32], index: 0, kind: input, shape index: {}]
  %s1 = inlined_call_operand.vmem [shape: f32[1,128], index: 1, kind: output, shape index: {}]
  $region1: #{tile.35} parent=0
    #allocation0 [shape = 'u8[4096]{0}', space=vmem, size = 0x1000, scoped, tag = 'scoped mem for output reshape']
    #allocation1 [shape = 'u8[4096]{0}', space=vmem, size = 0x1000, scoped, tag = 'scoped mem for input reshape']
    %s3 = ssub.s32 16, 1
    %v4 = vld [vmem:[%s0] sm:%s3]
    %5 = vst [vmem:[#allocation1] sm:%s3] %v4
    %v6 = vld [vmem:[#allocation1] sm:$0x1]
    %vm7 = vcmask 261120
    %8 = vst.msk [vmem:[#allocation0] sm:$0x1] %vm7, %v6
    %s9 = scalar_lea.vmem [#allocation1], 3
    %v10 = vld [vmem:[%s9] sm:$0x1]
    %11 = vrot.lane.b32.xlu0 %v10, 96
    %v12 = vpop.permute.xlu0 %11
    %vm13 = vcmask 1048320
    %14 = vst.msk [vmem:[#allocation0] sm:$0x1] %vm13, %v12
    %s15 = scalar_lea.vmem [#allocation1], 2
    %v16 = vld [vmem:[%s15] sm:$0x1]
    %17 = vrot.lane.b32.xlu0 %v16, 64
    %v18 = vpop.permute.xlu0 %17
    %vm19 = vcmask 785920
    %20 = vst.msk [vmem:[#allocation0] sm:$0x1] %vm19, %v18
    %s21 = scalar_lea.vmem [#allocation1], 1
    %v22 = vld [vmem:[%s21] sm:$0x1]
    %23 = vrot.lane.b32.xlu0 %v22, 32
    %v24 = vpop.permute.xlu0 %23
    %vm25 = vcmask 523520
    %26 = vst.msk [vmem:[#allocation0] sm:$0x1] %vm25, %v24
    %s28 = ssub.s32 2, 1
    %v29 = vld [vmem:[#allocation0] sm:%s28]
    %s31 = ssub.s32 2, 1
    %32 = vst [vmem:[%s1] sm:%s31] %v29

// kernel: tile.39
$region0: #{tile.39}
  #allocation0 [shape = 's32[1]{0}', space=sflag, size = 0x4, scoped, tag = 'scoped memory for tile.39']
  %s0 = inlined_call_operand.vmem [shape: f32[64], index: 0, kind: input, shape index: {}]
  %s1 = inlined_call_operand.vmem [shape: f32[2,64], index: 1, kind: output, shape index: {}]
  // Predicated region
  $region2: #{tile.39} parent=0 // pred_check
    _
  $region3: #{tile.39} parent=0 // pred_check_branch
    %3 = sbr.rel (0) target = $region5
  $region4: #{tile.39} parent=0 // pred_region
    _
  $region5: #{tile.39} parent=0 // pred_fallthru
    _
  %v4 = vld [vmem:[%s0] ss:$0 sm:$0xff]
  %5 = vst [vmem:[%s1] sm:$0x3] %v4

// kernel: tile.40
$region0: #{tile.40}
  %s0 = inlined_call_operand.vmem [shape: f32[2,64], index: 0, kind: input, shape index: {}]
  %s1 = inlined_call_operand.vmem [shape: f32[1,128], index: 1, kind: output, shape index: {}]
  $region1: #{tile.40} parent=0
    #allocation0 [shape = 'u8[4096]{0}', space=vmem, size = 0x1000, scoped, tag = 'scoped mem for output reshape']
    #allocation1 [shape = 'u8[4096]{0}', space=vmem, size = 0x1000, scoped, tag = 'scoped mem for input reshape']
    %s3 = ssub.s32 4, 1
    %v4 = vld [vmem:[%s0] sm:%s3]
    %5 = vst [vmem:[#allocation1] sm:%s3] %v4
    %v6 = vld [vmem:[#allocation1] sm:$0x1]
    %vm7 = vcmask 523264
    %8 = vst.msk [vmem:[#allocation0] sm:$0x1] %vm7, %v6
    %s9 = scalar_lea.vmem [#allocation1], 1
    %v10 = vld [vmem:[%s9] sm:$0x1]
    %11 = vrot.lane.b32.xlu0 %v10, 64
    %v12 = vpop.permute.xlu0 %11
    %vm13 = vcmask 1048064
    %14 = vst.msk [vmem:[#allocation0] sm:$0x1] %vm13, %v12
    %s16 = ssub.s32 2, 1
    %v17 = vld [vmem:[#allocation0] sm:%s16]
    %s19 = ssub.s32 2, 1
    %20 = vst [vmem:[%s1] sm:%s19] %v17

// kernel: fc_discriminator.1
$region0: #{fc_discriminator.1}
  #allocation0 [shape = 'u32[]', space=smem, size = 0x4, offset = 0x4, fixed_abs, tag = 'smem constant byte address 0x4 - core index']
  #allocation1 [shape = 'u32[72,128]{1,0:T(1,128)}', space=vmem, size = 0x9000, scoped, tag = 'internal scratch']
  #allocation2 [shape = 'f32[1,1]{1,0:T(1,128)S(1)}', space=vmem, size = 0x200, scoped, tag = 'scoped memory for fc_discriminator.1']
  %s0 = inlined_call_operand.vmem [shape: f32[2,32,128], index: 0, kind: input, shape index: {}]
  %s1 = inlined_call_operand.vmem [shape: bf16[128,512], index: 1, kind: input, shape index: {}]
  %s2 = inlined_call_operand.vmem [shape: bf16[128,512], index: 2, kind: input, shape index: {}]
  %s3 = inlined_call_operand.vmem [shape: bf16[128,512], index: 3, kind: input, shape index: {}]
  %s4 = inlined_call_operand.vmem [shape: bf16[128,512], index: 4, kind: input, shape index: {}]
  %s5 = inlined_call_operand.vmem [shape: bf16[128,4], index: 5, kind: input, shape index: {}]
  %s6 = inlined_call_operand.vmem [shape: f32[1,128], index: 6, kind: input, shape index: {}]
  %s7 = inlined_call_operand.vmem [shape: f32[1,128], index: 7, kind: input, shape index: {}]
  %s8 = inlined_call_operand.vmem [shape: f32[1,128], index: 8, kind: input, shape index: {}]
  %s9 = inlined_call_operand.vmem [shape: f32[1,128], index: 9, kind: input, shape index: {}]
  %s10 = inlined_call_operand.<no memory space> [shape: f32[1,1], index: 10, kind: input, shape index: {}]
  %s11 = inlined_call_operand.vmem [shape: f32[2,1,1], index: 11, kind: output, shape index: {}]
  %s12 = sld [smem:[#allocation0]]
  $region77: #{fc_discriminator.1} parent=0
    _
  %s14 = ssub.s32 1, %s12
  %s15 = scalar_select 0, %s14, %s12
  %v16 = vstv %s10
  %17 = vst [vmem:[#allocation2] sm:$0x1] %v16
  loop: start=0, step=1, limit=4
  $region2: #{fc_discriminator.1} parent=0 // loop_pre_header
    _
  $region3: #{fc_discriminator.1} parent=0 // loop_header
    %s19 = sphi 0, %s23
    %p20 = scmp.ge.s32.totalorder %s19, 4
    %s29 = sphi 0, %s31
    %s32 = sphi 0, %s29
    %s33 = sphi 0, %s32
    %s49 = sphi 0, %s33
    %s53 = sphi 0, %s53
    %s55 = sphi 0, %s53
    %s56 = sphi 0, %s55
    %s70 = sphi 0, %s56
    %s74 = sphi 0, %s74
    %s76 = sphi 0, %s74
    %s77 = sphi 0, %s76
    %s91 = sphi 0, %s77
    %s95 = sphi 0, %s95
    %s97 = sphi 0, %s95
    %s98 = sphi 0, %s97
    %s112 = sphi 0, %s98
    %s116 = sphi 0, %s116
    %s118 = sphi 0, %s116
    %s119 = sphi 0, %s118
    %s133 = sphi 0, %s119
    %s137 = sphi 0, %s137
    %s139 = sphi 0, %s137
    %s140 = sphi 0, %s139
    %s154 = sphi 0, %s140
    %s158 = sphi 0, %s158
    %s160 = sphi 0, %s158
    %s161 = sphi 0, %s160
    %s175 = sphi 0, %s161
    %s179 = sphi 0, %s179
    %s181 = sphi 0, %s179
    %s182 = sphi 0, %s181
    %s196 = sphi 0, %s182
    %s200 = sphi 0, %s200
    %s202 = sphi 0, %s200
    %s203 = sphi 0, %s202
    %s217 = sphi 0, %s203
    %s221 = sphi 0, %s221
    %s223 = sphi 0, %s221
    %s224 = sphi 0, %s223
    %s238 = sphi 0, %s224
    %s242 = sphi 0, %s242
    %s244 = sphi 0, %s242
    %s245 = sphi 0, %s244
    %s259 = sphi 0, %s245
    %s265 = sphi 0, %s267
    %s268 = sphi 0, %s265
    %s269 = sphi 0, %s268
    %s285 = sphi 0, %s269
  $region4: #{fc_discriminator.1} parent=0 // loop_header_branch
    %22 = sbr.rel (%p20) target = $region8
  $region5: #{fc_discriminator.1} parent=0 // loop_body
    %s24 = ssub.s32 %s19, 1
    %s25 = ssub.s32 %s19, 2
    %s26 = sadd.s32 %s19, 1
    %s27 = ssub.s32 %s19, %s26
    %p28 = scmp.eq.s32.totalorder %s27, 0
    %s30 = sadd.s32 %s29, 1
    %s31 = scalar_select %p28, %s29, %s30
    %p34 = pneg %p28
    %p35 = scmp.eq.s32.totalorder %s19, 1
    %p36 = por %p34, %p35
    %p37 = scmp.ne.s32.totalorder %s29, %s32
    %p38 = scmp.eq.s32.totalorder %s19, 0
    %p39 = por %p37, %p38
    %p40 = scmp.ne.s32.totalorder %s29, %s32
    %p41 = scmp.eq.s32.totalorder %s24, 1
    %p42 = por %p40, %p41
    %p43 = scmp.ne.s32.totalorder %s32, %s33
    %p44 = scmp.eq.s32.totalorder %s24, 0
    %p45 = por %p43, %p44
    %p46 = scmp.ne.s32.totalorder %s32, %s33
    %p47 = scmp.eq.s32.totalorder %s25, 1
    %p48 = por %p46, %p47
    %p50 = scmp.ne.s32.totalorder %s33, %s49
    %p51 = scmp.eq.s32.totalorder %s25, 0
    %p52 = por %p50, %p51
    %s54 = sadd.s32 %s53, 1
    %p57 = scmp.eq.s32.totalorder %s19, 1
    %p58 = scmp.ne.s32.totalorder %s53, %s55
    %p59 = scmp.eq.s32.totalorder %s19, 0
    %p60 = por %p58, %p59
    %p61 = scmp.ne.s32.totalorder %s53, %s55
    %p62 = scmp.eq.s32.totalorder %s24, 1
    %p63 = por %p61, %p62
    %p64 = scmp.ne.s32.totalorder %s55, %s56
    %p65 = scmp.eq.s32.totalorder %s24, 0
    %p66 = por %p64, %p65
    %p67 = scmp.ne.s32.totalorder %s55, %s56
    %p68 = scmp.eq.s32.totalorder %s25, 1
    %p69 = por %p67, %p68
    %p71 = scmp.ne.s32.totalorder %s56, %s70
    %p72 = scmp.eq.s32.totalorder %s25, 0
    %p73 = por %p71, %p72
    %s75 = sadd.s32 %s74, 1
    %p78 = scmp.eq.s32.totalorder %s19, 1
    %p79 = scmp.ne.s32.totalorder %s74, %s76
    %p80 = scmp.eq.s32.totalorder %s19, 0
    %p81 = por %p79, %p80
    %p82 = scmp.ne.s32.totalorder %s74, %s76
    %p83 = scmp.eq.s32.totalorder %s24, 1
    %p84 = por %p82, %p83
    %p85 = scmp.ne.s32.totalorder %s76, %s77
    %p86 = scmp.eq.s32.totalorder %s24, 0
    %p87 = por %p85, %p86
    %p88 = scmp.ne.s32.totalorder %s76, %s77
    %p89 = scmp.eq.s32.totalorder %s25, 1
    %p90 = por %p88, %p89
    %p92 = scmp.ne.s32.totalorder %s77, %s91
    %p93 = scmp.eq.s32.totalorder %s25, 0
    %p94 = por %p92, %p93
    %s96 = sadd.s32 %s95, 1
    %p99 = scmp.eq.s32.totalorder %s19, 1
    %p100 = scmp.ne.s32.totalorder %s95, %s97
    %p101 = scmp.eq.s32.totalorder %s19, 0
    %p102 = por %p100, %p101
    %p103 = scmp.ne.s32.totalorder %s95, %s97
    %p104 = scmp.eq.s32.totalorder %s24, 1
    %p105 = por %p103, %p104
    %p106 = scmp.ne.s32.totalorder %s97, %s98
    %p107 = scmp.eq.s32.totalorder %s24, 0
    %p108 = por %p106, %p107
    %p109 = scmp.ne.s32.totalorder %s97, %s98
    %p110 = scmp.eq.s32.totalorder %s25, 1
    %p111 = por %p109, %p110
    %p113 = scmp.ne.s32.totalorder %s98, %s112
    %p114 = scmp.eq.s32.totalorder %s25, 0
    %p115 = por %p113, %p114
    %s117 = sadd.s32 %s116, 1
    %p120 = scmp.eq.s32.totalorder %s19, 1
    %p121 = scmp.ne.s32.totalorder %s116, %s118
    %p122 = scmp.eq.s32.totalorder %s19, 0
    %p123 = por %p121, %p122
    %p124 = scmp.ne.s32.totalorder %s116, %s118
    %p125 = scmp.eq.s32.totalorder %s24, 1
    %p126 = por %p124, %p125
    %p127 = scmp.ne.s32.totalorder %s118, %s119
    %p128 = scmp.eq.s32.totalorder %s24, 0
    %p129 = por %p127, %p128
    %p130 = scmp.ne.s32.totalorder %s118, %s119
    %p131 = scmp.eq.s32.totalorder %s25, 1
    %p132 = por %p130, %p131
    %p134 = scmp.ne.s32.totalorder %s119, %s133
    %p135 = scmp.eq.s32.totalorder %s25, 0
    %p136 = por %p134, %p135
    %s138 = sadd.s32 %s137, 1
    %p141 = scmp.eq.s32.totalorder %s19, 1
    %p142 = scmp.ne.s32.totalorder %s137, %s139
    %p143 = scmp.eq.s32.totalorder %s19, 0
    %p144 = por %p142, %p143
    %p145 = scmp.ne.s32.totalorder %s137, %s139
    %p146 = scmp.eq.s32.totalorder %s24, 1
    %p147 = por %p145, %p146
    %p148 = scmp.ne.s32.totalorder %s139, %s140
    %p149 = scmp.eq.s32.totalorder %s24, 0
    %p150 = por %p148, %p149
    %p151 = scmp.ne.s32.totalorder %s139, %s140
    %p152 = scmp.eq.s32.totalorder %s25, 1
    %p153 = por %p151, %p152
    %p155 = scmp.ne.s32.totalorder %s140, %s154
    %p156 = scmp.eq.s32.totalorder %s25, 0
    %p157 = por %p155, %p156
    %s159 = sadd.s32 %s158, 1
    %p162 = scmp.eq.s32.totalorder %s19, 1
    %p163 = scmp.ne.s32.totalorder %s158, %s160
    %p164 = scmp.eq.s32.totalorder %s19, 0
    %p165 = por %p163, %p164
    %p166 = scmp.ne.s32.totalorder %s158, %s160
    %p167 = scmp.eq.s32.totalorder %s24, 1
    %p168 = por %p166, %p167
    %p169 = scmp.ne.s32.totalorder %s160, %s161
    %p170 = scmp.eq.s32.totalorder %s24, 0
    %p171 = por %p169, %p170
    %p172 = scmp.ne.s32.totalorder %s160, %s161
    %p173 = scmp.eq.s32.totalorder %s25, 1
    %p174 = por %p172, %p173
    %p176 = scmp.ne.s32.totalorder %s161, %s175
    %p177 = scmp.eq.s32.totalorder %s25, 0
    %p178 = por %p176, %p177
    %s180 = sadd.s32 %s179, 1
    %p183 = scmp.eq.s32.totalorder %s19, 1
    %p184 = scmp.ne.s32.totalorder %s179, %s181
    %p185 = scmp.eq.s32.totalorder %s19, 0
    %p186 = por %p184, %p185
    %p187 = scmp.ne.s32.totalorder %s179, %s181
    %p188 = scmp.eq.s32.totalorder %s24, 1
    %p189 = por %p187, %p188
    %p190 = scmp.ne.s32.totalorder %s181, %s182
    %p191 = scmp.eq.s32.totalorder %s24, 0
    %p192 = por %p190, %p191
    %p193 = scmp.ne.s32.totalorder %s181, %s182
    %p194 = scmp.eq.s32.totalorder %s25, 1
    %p195 = por %p193, %p194
    %p197 = scmp.ne.s32.totalorder %s182, %s196
    %p198 = scmp.eq.s32.totalorder %s25, 0
    %p199 = por %p197, %p198
    %s201 = sadd.s32 %s200, 1
    %p204 = scmp.eq.s32.totalorder %s19, 1
    %p205 = scmp.ne.s32.totalorder %s200, %s202
    %p206 = scmp.eq.s32.totalorder %s19, 0
    %p207 = por %p205, %p206
    %p208 = scmp.ne.s32.totalorder %s200, %s202
    %p209 = scmp.eq.s32.totalorder %s24, 1
    %p210 = por %p208, %p209
    %p211 = scmp.ne.s32.totalorder %s202, %s203
    %p212 = scmp.eq.s32.totalorder %s24, 0
    %p213 = por %p211, %p212
    %p214 = scmp.ne.s32.totalorder %s202, %s203
    %p215 = scmp.eq.s32.totalorder %s25, 1
    %p216 = por %p214, %p215
    %p218 = scmp.ne.s32.totalorder %s203, %s217
    %p219 = scmp.eq.s32.totalorder %s25, 0
    %p220 = por %p218, %p219
    %s222 = sadd.s32 %s221, 1
    %p225 = scmp.eq.s32.totalorder %s19, 1
    %p226 = scmp.ne.s32.totalorder %s221, %s223
    %p227 = scmp.eq.s32.totalorder %s19, 0
    %p228 = por %p226, %p227
    %p229 = scmp.ne.s32.totalorder %s221, %s223
    %p230 = scmp.eq.s32.totalorder %s24, 1
    %p231 = por %p229, %p230
    %p232 = scmp.ne.s32.totalorder %s223, %s224
    %p233 = scmp.eq.s32.totalorder %s24, 0
    %p234 = por %p232, %p233
    %p235 = scmp.ne.s32.totalorder %s223, %s224
    %p236 = scmp.eq.s32.totalorder %s25, 1
    %p237 = por %p235, %p236
    %p239 = scmp.ne.s32.totalorder %s224, %s238
    %p240 = scmp.eq.s32.totalorder %s25, 0
    %p241 = por %p239, %p240
    %s243 = sadd.s32 %s242, 1
    %p246 = scmp.eq.s32.totalorder %s19, 1
    %p247 = scmp.ne.s32.totalorder %s242, %s244
    %p248 = scmp.eq.s32.totalorder %s19, 0
    %p249 = por %p247, %p248
    %p250 = scmp.ne.s32.totalorder %s242, %s244
    %p251 = scmp.eq.s32.totalorder %s24, 1
    %p252 = por %p250, %p251
    %p253 = scmp.ne.s32.totalorder %s244, %s245
    %p254 = scmp.eq.s32.totalorder %s24, 0
    %p255 = por %p253, %p254
    %p256 = scmp.ne.s32.totalorder %s244, %s245
    %p257 = scmp.eq.s32.totalorder %s25, 1
    %p258 = por %p256, %p257
    %p260 = scmp.ne.s32.totalorder %s245, %s259
    %p261 = scmp.eq.s32.totalorder %s25, 0
    %p262 = por %p260, %p261
    %s263 = ssub.s32 %s19, %s26
    %p264 = scmp.eq.s32.totalorder %s263, 0
    %s266 = sadd.s32 %s265, 1
    %s267 = scalar_select %p264, %s265, %s266
    %p270 = pneg %p264
    %p271 = scmp.eq.s32.totalorder %s19, 1
    %p272 = por %p270, %p271
    %p273 = scmp.ne.s32.totalorder %s265, %s268
    %p274 = scmp.eq.s32.totalorder %s19, 0
    %p275 = por %p273, %p274
    %p276 = scmp.ne.s32.totalorder %s265, %s268
    %p277 = scmp.eq.s32.totalorder %s24, 1
    %p278 = por %p276, %p277
    %p279 = scmp.ne.s32.totalorder %s268, %s269
    %p280 = scmp.eq.s32.totalorder %s24, 0
    %p281 = por %p279, %p280
    %p282 = scmp.ne.s32.totalorder %s268, %s269
    %p283 = scmp.eq.s32.totalorder %s25, 1
    %p284 = por %p282, %p283
    %p286 = scmp.ne.s32.totalorder %s269, %s285
    %p287 = scmp.eq.s32.totalorder %s25, 0
    %p288 = por %p286, %p287
    %p289 = scmp.le.s32.totalorder 1, %s19
    %p290 = scmp.lt.s32.totalorder %s19, 3
    %p291 = pnand %p289, %p290
    %p292 = pneg %p291
    // Predicated region
    $region9: #{fc_discriminator.1} parent=5 // pred_check
      _
    $region10: #{fc_discriminator.1} parent=5 // pred_check_branch
      %294 = sbr.rel (%p291) target = $region12
    $region11: #{fc_discriminator.1} parent=5 // pred_region
      %s295 = ssub.s32 %s19, 1
      // Predicated region
      $region13: #{fc_discriminator.1} parent=11 // pred_check
        %p296 = pneg %p66
      $region14: #{fc_discriminator.1} parent=11 // pred_check_branch
        %298 = sbr.rel (%p296) target = $region16
      $region15: #{fc_discriminator.1} parent=11 // pred_region
        _
      $region16: #{fc_discriminator.1} parent=11 // pred_fallthru
        _
      // Predicated region
      $region17: #{fc_discriminator.1} parent=11 // pred_check
        %p299 = pneg %p87
      $region18: #{fc_discriminator.1} parent=11 // pred_check_branch
        %301 = sbr.rel (%p299) target = $region20
      $region19: #{fc_discriminator.1} parent=11 // pred_region
        _
      $region20: #{fc_discriminator.1} parent=11 // pred_fallthru
        _
      // Predicated region
      $region21: #{fc_discriminator.1} parent=11 // pred_check
        %p302 = pneg %p108
      $region22: #{fc_discriminator.1} parent=11 // pred_check_branch
        %304 = sbr.rel (%p302) target = $region24
      $region23: #{fc_discriminator.1} parent=11 // pred_region
        _
      $region24: #{fc_discriminator.1} parent=11 // pred_fallthru
        _
      // Predicated region
      $region25: #{fc_discriminator.1} parent=11 // pred_check
        %p305 = pneg %p129
      $region26: #{fc_discriminator.1} parent=11 // pred_check_branch
        %307 = sbr.rel (%p305) target = $region28
      $region27: #{fc_discriminator.1} parent=11 // pred_region
        _
      $region28: #{fc_discriminator.1} parent=11 // pred_fallthru
        _
      // Predicated region
      $region29: #{fc_discriminator.1} parent=11 // pred_check
        %p308 = pneg %p150
      $region30: #{fc_discriminator.1} parent=11 // pred_check_branch
        %310 = sbr.rel (%p308) target = $region32
      $region31: #{fc_discriminator.1} parent=11 // pred_region
        _
      $region32: #{fc_discriminator.1} parent=11 // pred_fallthru
        _
      // Predicated region
      $region33: #{fc_discriminator.1} parent=11 // pred_check
        %p311 = pneg %p171
      $region34: #{fc_discriminator.1} parent=11 // pred_check_branch
        %313 = sbr.rel (%p311) target = $region36
      $region35: #{fc_discriminator.1} parent=11 // pred_region
        _
      $region36: #{fc_discriminator.1} parent=11 // pred_fallthru
        _
      // Predicated region
      $region37: #{fc_discriminator.1} parent=11 // pred_check
        %p314 = pneg %p192
      $region38: #{fc_discriminator.1} parent=11 // pred_check_branch
        %316 = sbr.rel (%p314) target = $region40
      $region39: #{fc_discriminator.1} parent=11 // pred_region
        _
      $region40: #{fc_discriminator.1} parent=11 // pred_fallthru
        _
      // Predicated region
      $region41: #{fc_discriminator.1} parent=11 // pred_check
        %p317 = pneg %p213
      $region42: #{fc_discriminator.1} parent=11 // pred_check_branch
        %319 = sbr.rel (%p317) target = $region44
      $region43: #{fc_discriminator.1} parent=11 // pred_region
        _
      $region44: #{fc_discriminator.1} parent=11 // pred_fallthru
        _
      // Predicated region
      $region45: #{fc_discriminator.1} parent=11 // pred_check
        %p320 = pneg %p234
      $region46: #{fc_discriminator.1} parent=11 // pred_check_branch
        %322 = sbr.rel (%p320) target = $region48
      $region47: #{fc_discriminator.1} parent=11 // pred_region
        _
      $region48: #{fc_discriminator.1} parent=11 // pred_fallthru
        _
      // Predicated region
      $region49: #{fc_discriminator.1} parent=11 // pred_check
        %p323 = pneg %p255
      $region50: #{fc_discriminator.1} parent=11 // pred_check_branch
        %325 = sbr.rel (%p323) target = $region52
      $region51: #{fc_discriminator.1} parent=11 // pred_region
        _
      $region52: #{fc_discriminator.1} parent=11 // pred_fallthru
        _
    $region12: #{fc_discriminator.1} parent=5 // pred_fallthru
      _
    %p326 = scmp.lt.s32.totalorder %s19, 2
    // Predicated region
    $region53: #{fc_discriminator.1} parent=5 // pred_check
      %p327 = pneg %p326
    $region54: #{fc_discriminator.1} parent=5 // pred_check_branch
      %329 = sbr.rel (%p327) target = $region56
    $region55: #{fc_discriminator.1} parent=5 // pred_region
      // Predicated region
      $region57: #{fc_discriminator.1} parent=55 // pred_check
        %p330 = pneg %p39
      $region58: #{fc_discriminator.1} parent=55 // pred_check_branch
        %332 = sbr.rel (%p330) target = $region60
      $region59: #{fc_discriminator.1} parent=55 // pred_region
        %p333 = scmp.lt.s32.totalorder %s19, 1
        %s334 = scalar_select %p333, %s19, 1
        %s335 = smul.addr %s334, 4
        %s336 = smul.addr %s335, 8
        %s337 = scalar_lea.vmem %s0, %s336
      $region60: #{fc_discriminator.1} parent=55 // pred_fallthru
        _
    $region56: #{fc_discriminator.1} parent=5 // pred_fallthru
      _
    %p338 = scmp.le.s32.totalorder 1, %s19
    %p339 = scmp.lt.s32.totalorder %s19, 3
    %p340 = pnand %p338, %p339
    %p341 = pneg %p340
    // Predicated region
    $region61: #{fc_discriminator.1} parent=5 // pred_check
      _
    $region62: #{fc_discriminator.1} parent=5 // pred_check_branch
      %343 = sbr.rel (%p340) target = $region64
    $region63: #{fc_discriminator.1} parent=5 // pred_region
      %s344 = ssub.s32 %s19, 1
      %p345 = scmp.lt.s32.totalorder %s24, 1
      %s346 = scalar_select %p345, %s24, 1
      %s347 = smul.addr %s346, 4
      %s348 = smul.addr %s347, 8
      %s349 = scalar_lea.vmem %s0, %s348
      %p350 = pneg %p45
      %p351 = pneg %p42
      %p352 = pneg %p66
      %p353 = pneg %p63
      %p354 = pneg %p87
      %p355 = pneg %p84
      %p356 = pneg %p108
      %p357 = pneg %p105
      %p358 = pneg %p129
      %p359 = pneg %p126
      %p360 = pneg %p150
      %p361 = pneg %p147
      %p362 = pneg %p171
      %p363 = pneg %p168
      %p364 = pneg %p192
      %p365 = pneg %p189
      %p366 = pneg %p213
      %p367 = pneg %p210
      %p368 = pneg %p234
      %p369 = pneg %p231
      %p370 = pneg %p255
      %p371 = pneg %p252
      %p372 = pneg %p281
      %p373 = pneg %p278
      %p374 = scmp.lt.s32.totalorder %s24, 1
      %s375 = scalar_select %p374, %s24, 1
      %s376 = scalar_lea.vmem %s11, %s375
      %p377 = scmp.lt.s32.totalorder %s24, 1
      %s378 = scalar_select %p377, %s24, 1
      %s379 = smul.addr %s378, 4
      %s380 = smul.addr %s379, 8
      %s381 = scalar_lea.vmem %s0, %s380
      %p382 = scmp.lt.s32.totalorder %s24, 1
      %s383 = scalar_select %p382, %s24, 1
      %s384 = scalar_lea.vmem %s11, %s383
      %v385 = vld [vmem:[%s381] sm:$0xff]
      %v386 = vld [vmem:[%s381 + $0x8] sm:$0xff]
      %v387 = vld [vmem:[%s381 + $0x10] sm:$0xff]
      %v388 = vld [vmem:[%s381 + $0x18] sm:$0xff]
      %v389 = vpack.c.bf16 %v386, %v385
      %v390 = vpack.c.bf16 %v388, %v387
      %v391 = vld [vmem:[%s1] sm:$0xff]
      %v392 = vld [vmem:[%s1 + $0x8] sm:$0xff]
      %v393 = vld [vmem:[%s1 + $0x10] sm:$0xff]
      %v394 = vld [vmem:[%s1 + $0x18] sm:$0xff]
      %v395 = vld [vmem:[%s1 + $0x20] sm:$0xff]
      %v396 = vld [vmem:[%s1 + $0x28] sm:$0xff]
      %v397 = vld [vmem:[%s1 + $0x30] sm:$0xff]
      %v398 = vld [vmem:[%s1 + $0x38] sm:$0xff]
      %v399 = vld [vmem:[%s1 + $0x40] sm:$0xff]
      %v400 = vld [vmem:[%s1 + $0x48] sm:$0xff]
      %v401 = vld [vmem:[%s1 + $0x50] sm:$0xff]
      %v402 = vld [vmem:[%s1 + $0x58] sm:$0xff]
      %v403 = vld [vmem:[%s1 + $0x60] sm:$0xff]
      %v404 = vld [vmem:[%s1 + $0x68] sm:$0xff]
      %v405 = vld [vmem:[%s1 + $0x70] sm:$0xff]
      %v406 = vld [vmem:[%s1 + $0x78] sm:$0xff]
      %v407 = vld [vmem:[%s1 + $0x80] sm:$0xff]
      %v408 = vld [vmem:[%s1 + $0x88] sm:$0xff]
      %v409 = vld [vmem:[%s1 + $0x90] sm:$0xff]
      %v410 = vld [vmem:[%s1 + $0x98] sm:$0xff]
      %v411 = vld [vmem:[%s1 + $0xa0] sm:$0xff]
      %v412 = vld [vmem:[%s1 + $0xa8] sm:$0xff]
      %v413 = vld [vmem:[%s1 + $0xb0] sm:$0xff]
      %v414 = vld [vmem:[%s1 + $0xb8] sm:$0xff]
      %v415 = vld [vmem:[%s1 + $0xc0] sm:$0xff]
      %v416 = vld [vmem:[%s1 + $0xc8] sm:$0xff]
      %v417 = vld [vmem:[%s1 + $0xd0] sm:$0xff]
      %v418 = vld [vmem:[%s1 + $0xd8] sm:$0xff]
      %v419 = vld [vmem:[%s1 + $0xe0] sm:$0xff]
      %v420 = vld [vmem:[%s1 + $0xe8] sm:$0xff]
      %v421 = vld [vmem:[%s1 + $0xf0] sm:$0xff]
      %v422 = vld [vmem:[%s1 + $0xf8] sm:$0xff]
      %v455 = vunpack.c.l.b16 %v391
      %v456 = vunpack.c.h.b16 %v391
      %v457 = vunpack.c.l.b16 %v392
      %v458 = vunpack.c.h.b16 %v392
      %v459 = vunpack.c.l.b16 %v393
      %v460 = vunpack.c.h.b16 %v393
      %v461 = vunpack.c.l.b16 %v394
      %v462 = vunpack.c.h.b16 %v394
      %v463 = vunpack.c.l.b16 %v395
      %v464 = vunpack.c.h.b16 %v395
      %v465 = vunpack.c.l.b16 %v396
      %v466 = vunpack.c.h.b16 %v396
      %v467 = vunpack.c.l.b16 %v397
      %v468 = vunpack.c.h.b16 %v397
      %v469 = vunpack.c.l.b16 %v398
      %v470 = vunpack.c.h.b16 %v398
      %v471 = vunpack.c.l.b16 %v399
      %v472 = vunpack.c.h.b16 %v399
      %v473 = vunpack.c.l.b16 %v400
      %v474 = vunpack.c.h.b16 %v400
      %v475 = vunpack.c.l.b16 %v401
      %v476 = vunpack.c.h.b16 %v401
      %v477 = vunpack.c.l.b16 %v402
      %v478 = vunpack.c.h.b16 %v402
      %v479 = vunpack.c.l.b16 %v403
      %v480 = vunpack.c.h.b16 %v403
      %v481 = vunpack.c.l.b16 %v404
      %v482 = vunpack.c.h.b16 %v404
      %v483 = vunpack.c.l.b16 %v405
      %v484 = vunpack.c.h.b16 %v405
      %v485 = vunpack.c.l.b16 %v406
      %v486 = vunpack.c.h.b16 %v406
      %v487 = vunpack.c.l.b16 %v407
      %v488 = vunpack.c.h.b16 %v407
      %v489 = vunpack.c.l.b16 %v408
      %v490 = vunpack.c.h.b16 %v408
      %v491 = vunpack.c.l.b16 %v409
      %v492 = vunpack.c.h.b16 %v409
      %v493 = vunpack.c.l.b16 %v410
      %v494 = vunpack.c.h.b16 %v410
      %v495 = vunpack.c.l.b16 %v411
      %v496 = vunpack.c.h.b16 %v411
      %v497 = vunpack.c.l.b16 %v412
      %v498 = vunpack.c.h.b16 %v412
      %v499 = vunpack.c.l.b16 %v413
      %v500 = vunpack.c.h.b16 %v413
      %v501 = vunpack.c.l.b16 %v414
      %v502 = vunpack.c.h.b16 %v414
      %v503 = vunpack.c.l.b16 %v415
      %v504 = vunpack.c.h.b16 %v415
      %v505 = vunpack.c.l.b16 %v416
      %v506 = vunpack.c.h.b16 %v416
      %v507 = vunpack.c.l.b16 %v417
      %v508 = vunpack.c.h.b16 %v417
      %v509 = vunpack.c.l.b16 %v418
      %v510 = vunpack.c.h.b16 %v418
      %v511 = vunpack.c.l.b16 %v419
      %v512 = vunpack.c.h.b16 %v419
      %v513 = vunpack.c.l.b16 %v420
      %v514 = vunpack.c.h.b16 %v420
      %v515 = vunpack.c.l.b16 %v421
      %v516 = vunpack.c.h.b16 %v421
      %v517 = vunpack.c.l.b16 %v422
      %v518 = vunpack.c.h.b16 %v422
      %v519 = vpack.c.b16 %v459, %v455
      %v520 = vpack.c.b16 %v460, %v456
      %v521 = vpack.c.b16 %v461, %v457
      %v522 = vpack.c.b16 %v462, %v458
      %v523 = vpack.c.b16 %v467, %v463
      %v524 = vpack.c.b16 %v468, %v464
      %v525 = vpack.c.b16 %v469, %v465
      %v526 = vpack.c.b16 %v470, %v466
      %v527 = vpack.c.b16 %v475, %v471
      %v528 = vpack.c.b16 %v476, %v472
      %v529 = vpack.c.b16 %v477, %v473
      %v530 = vpack.c.b16 %v478, %v474
      %v531 = vpack.c.b16 %v483, %v479
      %v532 = vpack.c.b16 %v484, %v480
      %v533 = vpack.c.b16 %v485, %v481
      %v534 = vpack.c.b16 %v486, %v482
      %v535 = vpack.c.b16 %v491, %v487
      %v536 = vpack.c.b16 %v492, %v488
      %v537 = vpack.c.b16 %v493, %v489
      %v538 = vpack.c.b16 %v494, %v490
      %v539 = vpack.c.b16 %v499, %v495
      %v540 = vpack.c.b16 %v500, %v496
      %v541 = vpack.c.b16 %v501, %v497
      %v542 = vpack.c.b16 %v502, %v498
      %v543 = vpack.c.b16 %v507, %v503
      %v544 = vpack.c.b16 %v508, %v504
      %v545 = vpack.c.b16 %v509, %v505
      %v546 = vpack.c.b16 %v510, %v506
      %v547 = vpack.c.b16 %v515, %v511
      %v548 = vpack.c.b16 %v516, %v512
      %v549 = vpack.c.b16 %v517, %v513
      %v550 = vpack.c.b16 %v518, %v514
      %583 = vmatpush.bf16.msra.mxu0 %v547
      %584 = vmatpush.bf16.msra.mxu0 %v543
      %585 = vmatpush.bf16.msra.mxu0 %v539
      %586 = vmatpush.bf16.msra.mxu0 %v535
      %587 = vmatpush.bf16.msra.mxu0 %v531
      %588 = vmatpush.bf16.msra.mxu0 %v527
      %589 = vmatpush.bf16.msra.mxu0 %v523
      %590 = vmatpush.bf16.msra.mxu0 %v519
      %591 = vmatmul.bf16.gmra.mxu0 %v389
      %v592 = vpop.f32.mrf.mxu0
      %v593 = vadd.f32 0.0, %v592
      %v594 = vpop.f32.mrf.mxu0
      %v595 = vadd.f32 0.0, %v594
      %596 = vmatmul.bf16.gmra.mxu0 %v390
      %v597 = vpop.f32.mrf.mxu0
      %v598 = vadd.f32 0.0, %v597
      %v599 = vpop.f32.mrf.mxu0
      %v600 = vadd.f32 0.0, %v599
      %601 = vdwg.mxu0
      %602 = vmatpush.bf16.msra.mxu0 %v548
      %603 = vmatpush.bf16.msra.mxu0 %v544
      %604 = vmatpush.bf16.msra.mxu0 %v540
      %605 = vmatpush.bf16.msra.mxu0 %v536
      %606 = vmatpush.bf16.msra.mxu0 %v532
      %607 = vmatpush.bf16.msra.mxu0 %v528
      %608 = vmatpush.bf16.msra.mxu0 %v524
      %609 = vmatpush.bf16.msra.mxu0 %v520
      %610 = vmatmul.bf16.gmra.mxu0 %v389
      %v611 = vpop.f32.mrf.mxu0
      %v612 = vadd.f32 0.0, %v611
      %v613 = vpop.f32.mrf.mxu0
      %v614 = vadd.f32 0.0, %v613
      %615 = vmatmul.bf16.gmra.mxu0 %v390
      %v616 = vpop.f32.mrf.mxu0
      %v617 = vadd.f32 0.0, %v616
      %v618 = vpop.f32.mrf.mxu0
      %v619 = vadd.f32 0.0, %v618
      %620 = vdwg.mxu0
      %621 = vmatpush.bf16.msra.mxu0 %v549
      %622 = vmatpush.bf16.msra.mxu0 %v545
      %623 = vmatpush.bf16.msra.mxu0 %v541
      %624 = vmatpush.bf16.msra.mxu0 %v537
      %625 = vmatpush.bf16.msra.mxu0 %v533
      %626 = vmatpush.bf16.msra.mxu0 %v529
      %627 = vmatpush.bf16.msra.mxu0 %v525
      %628 = vmatpush.bf16.msra.mxu0 %v521
      %629 = vmatmul.bf16.gmra.mxu0 %v389
      %v630 = vpop.f32.mrf.mxu0
      %v631 = vadd.f32 0.0, %v630
      %v632 = vpop.f32.mrf.mxu0
      %v633 = vadd.f32 0.0, %v632
      %634 = vmatmul.bf16.gmra.mxu0 %v390
      %v635 = vpop.f32.mrf.mxu0
      %v636 = vadd.f32 0.0, %v635
      %v637 = vpop.f32.mrf.mxu0
      %v638 = vadd.f32 0.0, %v637
      %639 = vdwg.mxu0
      %640 = vmatpush.bf16.msra.mxu0 %v550
      %641 = vmatpush.bf16.msra.mxu0 %v546
      %642 = vmatpush.bf16.msra.mxu0 %v542
      %643 = vmatpush.bf16.msra.mxu0 %v538
      %644 = vmatpush.bf16.msra.mxu0 %v534
      %645 = vmatpush.bf16.msra.mxu0 %v530
      %646 = vmatpush.bf16.msra.mxu0 %v526
      %647 = vmatpush.bf16.msra.mxu0 %v522
      %648 = vmatmul.bf16.gmra.mxu0 %v389
      %v649 = vpop.f32.mrf.mxu0
      %v650 = vadd.f32 0.0, %v649
      %v651 = vpop.f32.mrf.mxu0
      %v652 = vadd.f32 0.0, %v651
      %653 = vmatmul.bf16.gmra.mxu0 %v390
      %v654 = vpop.f32.mrf.mxu0
      %v655 = vadd.f32 0.0, %v654
      %v656 = vpop.f32.mrf.mxu0
      %v657 = vadd.f32 0.0, %v656
      %658 = vdwg.mxu0
      %v659 = vlaneseq
      %v660 = vshrl.u32 %v659, 7
      %v661 = vadd.s32 %v660, 8
      %v662 = vlaneseq
      %v663 = vand.u32 %v662, 127
      %v664 = vadd.s32 %v663, 1
      %v665 = vmul.u32 %v660, 2
      %v666 = vmul.u32 %v661, 2
      %vm667 = vcmp.eq.s32.totalorder %v664, %v665
      %vm668 = vcmp.eq.s32.totalorder %v664, %v666
      %v669 = vsel %vm667, 1, 0
      %v670 = vsel %vm668, 1, 0
      %v671 = vcvt.s32.f32 %v669
      %v672 = vcvt.s32.f32 %v670
      %v673 = vadd.s32 %v665, 1
      %v674 = vadd.s32 %v666, 1
      %vm675 = vcmp.eq.s32.totalorder %v664, %v673
      %vm676 = vcmp.eq.s32.totalorder %v664, %v674
      %v677 = vsel %vm675, 1, 0
      %v678 = vsel %vm676, 1, 0
      %v679 = vcvt.s32.f32 %v677
      %v680 = vcvt.s32.f32 %v678
      %vm681 = vcmask 261120
      %v683 = vsel %vm681, %v679, 0
      %v686 = vsel %vm681, %v680, 0
      %688 = vmatpush.msra.mxu0 0.0
      %689 = vmatpush.msra.mxu0 0.0
      %690 = vmatpush.msra.mxu0 0.0
      %691 = vmatpush.msra.mxu0 0.0
      %692 = vmatpush.msra.mxu0 0.0
      %693 = vmatpush.msra.mxu0 0.0
      %694 = vmatpush.msra.mxu0 0.0
      %695 = vmatpush.msra.mxu0 0.0
      %696 = vmatpush.msra.mxu0 0.0
      %697 = vmatpush.msra.mxu0 0.0
      %698 = vmatpush.msra.mxu0 0.0
      %699 = vmatpush.msra.mxu0 0.0
      %700 = vmatpush.msra.mxu0 %v619
      %701 = vmatpush.msra.mxu0 %v617
      %702 = vmatpush.msra.mxu0 %v614
      %703 = vmatpush.msra.mxu0 %v612
      %704 = vmatmul.f32.gmra.mxu0 %v683
      %v705 = vpop.f32.mrf.mxu0
      %v706 = vadd.f32 0.0, %v705
      %707 = vmatmul.f32.gmra.mxu0 %v686
      %v708 = vpop.f32.mrf.mxu0
      %v709 = vadd.f32 0.0, %v708
      %710 = vdwg.mxu0
      %v712 = vsel %vm681, %v671, 0
      %v715 = vsel %vm681, %v672, 0
      %717 = vmatpush.msra.mxu0 0.0
      %718 = vmatpush.msra.mxu0 0.0
      %719 = vmatpush.msra.mxu0 0.0
      %720 = vmatpush.msra.mxu0 0.0
      %721 = vmatpush.msra.mxu0 0.0
      %722 = vmatpush.msra.mxu0 0.0
      %723 = vmatpush.msra.mxu0 0.0
      %724 = vmatpush.msra.mxu0 0.0
      %725 = vmatpush.msra.mxu0 0.0
      %726 = vmatpush.msra.mxu0 0.0
      %727 = vmatpush.msra.mxu0 0.0
      %728 = vmatpush.msra.mxu0 0.0
      %729 = vmatpush.msra.mxu0 %v600
      %730 = vmatpush.msra.mxu0 %v598
      %731 = vmatpush.msra.mxu0 %v595
      %732 = vmatpush.msra.mxu0 %v593
      %733 = vmatmul.f32.gmra.mxu0 %v712
      %v734 = vpop.f32.mrf.mxu0
      %v735 = vadd.f32 %v706, %v734
      %736 = vmatmul.f32.gmra.mxu0 %v715
      %v737 = vpop.f32.mrf.mxu0
      %v738 = vadd.f32 %v709, %v737
      %739 = vdwg.mxu0
      %v740 = vadd.s32 %v665, 2
      %v741 = vadd.s32 %v666, 2
      %vm742 = vcmp.eq.s32.totalorder %v664, %v740
      %vm743 = vcmp.eq.s32.totalorder %v664, %v741
      %v744 = vsel %vm742, 1, 0
      %v745 = vsel %vm743, 1, 0
      %v746 = vcvt.s32.f32 %v744
      %v747 = vcvt.s32.f32 %v745
      %v749 = vsel %vm681, %v746, 0
      %v752 = vsel %vm681, %v747, 0
      %754 = vmatpush.msra.mxu0 0.0
      %755 = vmatpush.msra.mxu0 0.0
      %756 = vmatpush.msra.mxu0 0.0
      %757 = vmatpush.msra.mxu0 0.0
      %758 = vmatpush.msra.mxu0 0.0
      %759 = vmatpush.msra.mxu0 0.0
      %760 = vmatpush.msra.mxu0 0.0
      %761 = vmatpush.msra.mxu0 0.0
      %762 = vmatpush.msra.mxu0 0.0
      %763 = vmatpush.msra.mxu0 0.0
      %764 = vmatpush.msra.mxu0 0.0
      %765 = vmatpush.msra.mxu0 0.0
      %766 = vmatpush.msra.mxu0 %v638
      %767 = vmatpush.msra.mxu0 %v636
      %768 = vmatpush.msra.mxu0 %v633
      %769 = vmatpush.msra.mxu0 %v631
      %770 = vmatmul.f32.gmra.mxu0 %v749
      %v771 = vpop.f32.mrf.mxu0
      %v772 = vadd.f32 0.0, %v771
      %773 = vmatmul.f32.gmra.mxu0 %v752
      %v774 = vpop.f32.mrf.mxu0
      %v775 = vadd.f32 0.0, %v774
      %776 = vdwg.mxu0
      %v777 = vadd.f32 %v735, %v772
      %v778 = vadd.f32 %v738, %v775
      %v779 = vadd.s32 %v665, 3
      %v780 = vadd.s32 %v666, 3
      %vm781 = vcmp.eq.s32.totalorder %v664, %v779
      %vm782 = vcmp.eq.s32.totalorder %v664, %v780
      %v783 = vsel %vm781, 1, 0
      %v784 = vsel %vm782, 1, 0
      %v785 = vcvt.s32.f32 %v783
      %v786 = vcvt.s32.f32 %v784
      %v788 = vsel %vm681, %v785, 0
      %v791 = vsel %vm681, %v786, 0
      %793 = vmatpush.msra.mxu0 0.0
      %794 = vmatpush.msra.mxu0 0.0
      %795 = vmatpush.msra.mxu0 0.0
      %796 = vmatpush.msra.mxu0 0.0
      %797 = vmatpush.msra.mxu0 0.0
      %798 = vmatpush.msra.mxu0 0.0
      %799 = vmatpush.msra.mxu0 0.0
      %800 = vmatpush.msra.mxu0 0.0
      %801 = vmatpush.msra.mxu0 0.0
      %802 = vmatpush.msra.mxu0 0.0
      %803 = vmatpush.msra.mxu0 0.0
      %804 = vmatpush.msra.mxu0 0.0
      %805 = vmatpush.msra.mxu0 %v657
      %806 = vmatpush.msra.mxu0 %v655
      %807 = vmatpush.msra.mxu0 %v652
      %808 = vmatpush.msra.mxu0 %v650
      %809 = vmatmul.f32.gmra.mxu0 %v788
      %v810 = vpop.f32.mrf.mxu0
      %v811 = vadd.f32 0.0, %v810
      %812 = vmatmul.f32.gmra.mxu0 %v791
      %v813 = vpop.f32.mrf.mxu0
      %v814 = vadd.f32 0.0, %v813
      %815 = vdwg.mxu0
      %v816 = vadd.f32 %v777, %v811
      %v817 = vadd.f32 %v778, %v814
      %v818 = vld [vmem:[%s6] sm:$0x1]
      %v820 = vperm.slane %v818, 0
      %v822 = vadd.f32 %v816, %v820
      %v823 = vadd.f32 %v817, %v820
      %vm824 = vcmp.gt.f32.partialorder %v822, 0.0
      %vm825 = vcmp.gt.f32.partialorder %v823, 0.0
      %v826 = vmul.f32 %v822, 0.2
      %v827 = vmul.f32 %v823, 0.2
      %v828 = vsel %vm824, %v822, %v826
      %v829 = vsel %vm825, %v823, %v827
      %v830 = vpack.c.bf16 %v829, %v828
      %v831 = vld [vmem:[%s2] sm:$0xff]
      %v832 = vld [vmem:[%s2 + $0x8] sm:$0xff]
      %v833 = vld [vmem:[%s2 + $0x10] sm:$0xff]
      %v834 = vld [vmem:[%s2 + $0x18] sm:$0xff]
      %v835 = vld [vmem:[%s2 + $0x20] sm:$0xff]
      %v836 = vld [vmem:[%s2 + $0x28] sm:$0xff]
      %v837 = vld [vmem:[%s2 + $0x30] sm:$0xff]
      %v838 = vld [vmem:[%s2 + $0x38] sm:$0xff]
      %v839 = vld [vmem:[%s2 + $0x40] sm:$0xff]
      %v840 = vld [vmem:[%s2 + $0x48] sm:$0xff]
      %v841 = vld [vmem:[%s2 + $0x50] sm:$0xff]
      %v842 = vld [vmem:[%s2 + $0x58] sm:$0xff]
      %v843 = vld [vmem:[%s2 + $0x60] sm:$0xff]
      %v844 = vld [vmem:[%s2 + $0x68] sm:$0xff]
      %v845 = vld [vmem:[%s2 + $0x70] sm:$0xff]
      %v846 = vld [vmem:[%s2 + $0x78] sm:$0xff]
      %v847 = vld [vmem:[%s2 + $0x80] sm:$0xff]
      %v848 = vld [vmem:[%s2 + $0x88] sm:$0xff]
      %v849 = vld [vmem:[%s2 + $0x90] sm:$0xff]
      %v850 = vld [vmem:[%s2 + $0x98] sm:$0xff]
      %v851 = vld [vmem:[%s2 + $0xa0] sm:$0xff]
      %v852 = vld [vmem:[%s2 + $0xa8] sm:$0xff]
      %v853 = vld [vmem:[%s2 + $0xb0] sm:$0xff]
      %v854 = vld [vmem:[%s2 + $0xb8] sm:$0xff]
      %v855 = vld [vmem:[%s2 + $0xc0] sm:$0xff]
      %v856 = vld [vmem:[%s2 + $0xc8] sm:$0xff]
      %v857 = vld [vmem:[%s2 + $0xd0] sm:$0xff]
      %v858 = vld [vmem:[%s2 + $0xd8] sm:$0xff]
      %v859 = vld [vmem:[%s2 + $0xe0] sm:$0xff]
      %v860 = vld [vmem:[%s2 + $0xe8] sm:$0xff]
      %v861 = vld [vmem:[%s2 + $0xf0] sm:$0xff]
      %v862 = vld [vmem:[%s2 + $0xf8] sm:$0xff]
      %v895 = vunpack.c.l.b16 %v831
      %v896 = vunpack.c.h.b16 %v831
      %v897 = vunpack.c.l.b16 %v832
      %v898 = vunpack.c.h.b16 %v832
      %v899 = vunpack.c.l.b16 %v833
      %v900 = vunpack.c.h.b16 %v833
      %v901 = vunpack.c.l.b16 %v834
      %v902 = vunpack.c.h.b16 %v834
      %v903 = vunpack.c.l.b16 %v835
      %v904 = vunpack.c.h.b16 %v835
      %v905 = vunpack.c.l.b16 %v836
      %v906 = vunpack.c.h.b16 %v836
      %v907 = vunpack.c.l.b16 %v837
      %v908 = vunpack.c.h.b16 %v837
      %v909 = vunpack.c.l.b16 %v838
      %v910 = vunpack.c.h.b16 %v838
      %v911 = vunpack.c.l.b16 %v839
      %v912 = vunpack.c.h.b16 %v839
      %v913 = vunpack.c.l.b16 %v840
      %v914 = vunpack.c.h.b16 %v840
      %v915 = vunpack.c.l.b16 %v841
      %v916 = vunpack.c.h.b16 %v841
      %v917 = vunpack.c.l.b16 %v842
      %v918 = vunpack.c.h.b16 %v842
      %v919 = vunpack.c.l.b16 %v843
      %v920 = vunpack.c.h.b16 %v843
      %v921 = vunpack.c.l.b16 %v844
      %v922 = vunpack.c.h.b16 %v844
      %v923 = vunpack.c.l.b16 %v845
      %v924 = vunpack.c.h.b16 %v845
      %v925 = vunpack.c.l.b16 %v846
      %v926 = vunpack.c.h.b16 %v846
      %v927 = vunpack.c.l.b16 %v847
      %v928 = vunpack.c.h.b16 %v847
      %v929 = vunpack.c.l.b16 %v848
      %v930 = vunpack.c.h.b16 %v848
      %v931 = vunpack.c.l.b16 %v849
      %v932 = vunpack.c.h.b16 %v849
      %v933 = vunpack.c.l.b16 %v850
      %v934 = vunpack.c.h.b16 %v850
      %v935 = vunpack.c.l.b16 %v851
      %v936 = vunpack.c.h.b16 %v851
      %v937 = vunpack.c.l.b16 %v852
      %v938 = vunpack.c.h.b16 %v852
      %v939 = vunpack.c.l.b16 %v853
      %v940 = vunpack.c.h.b16 %v853
      %v941 = vunpack.c.l.b16 %v854
      %v942 = vunpack.c.h.b16 %v854
      %v943 = vunpack.c.l.b16 %v855
      %v944 = vunpack.c.h.b16 %v855
      %v945 = vunpack.c.l.b16 %v856
      %v946 = vunpack.c.h.b16 %v856
      %v947 = vunpack.c.l.b16 %v857
      %v948 = vunpack.c.h.b16 %v857
      %v949 = vunpack.c.l.b16 %v858
      %v950 = vunpack.c.h.b16 %v858
      %v951 = vunpack.c.l.b16 %v859
      %v952 = vunpack.c.h.b16 %v859
      %v953 = vunpack.c.l.b16 %v860
      %v954 = vunpack.c.h.b16 %v860
      %v955 = vunpack.c.l.b16 %v861
      %v956 = vunpack.c.h.b16 %v861
      %v957 = vunpack.c.l.b16 %v862
      %v958 = vunpack.c.h.b16 %v862
      %v959 = vpack.c.b16 %v899, %v895
      %v960 = vpack.c.b16 %v900, %v896
      %v961 = vpack.c.b16 %v901, %v897
      %v962 = vpack.c.b16 %v902, %v898
      %v963 = vpack.c.b16 %v907, %v903
      %v964 = vpack.c.b16 %v908, %v904
      %v965 = vpack.c.b16 %v909, %v905
      %v966 = vpack.c.b16 %v910, %v906
      %v967 = vpack.c.b16 %v915, %v911
      %v968 = vpack.c.b16 %v916, %v912
      %v969 = vpack.c.b16 %v917, %v913
      %v970 = vpack.c.b16 %v918, %v914
      %v971 = vpack.c.b16 %v923, %v919
      %v972 = vpack.c.b16 %v924, %v920
      %v973 = vpack.c.b16 %v925, %v921
      %v974 = vpack.c.b16 %v926, %v922
      %v975 = vpack.c.b16 %v931, %v927
      %v976 = vpack.c.b16 %v932, %v928
      %v977 = vpack.c.b16 %v933, %v929
      %v978 = vpack.c.b16 %v934, %v930
      %v979 = vpack.c.b16 %v939, %v935
      %v980 = vpack.c.b16 %v940, %v936
      %v981 = vpack.c.b16 %v941, %v937
      %v982 = vpack.c.b16 %v942, %v938
      %v983 = vpack.c.b16 %v947, %v943
      %v984 = vpack.c.b16 %v948, %v944
      %v985 = vpack.c.b16 %v949, %v945
      %v986 = vpack.c.b16 %v950, %v946
      %v987 = vpack.c.b16 %v955, %v951
      %v988 = vpack.c.b16 %v956, %v952
      %v989 = vpack.c.b16 %v957, %v953
      %v990 = vpack.c.b16 %v958, %v954
      %1023 = vmatpush.bf16.msra.mxu0 %v987
      %1024 = vmatpush.bf16.msra.mxu0 %v983
      %1025 = vmatpush.bf16.msra.mxu0 %v979
      %1026 = vmatpush.bf16.msra.mxu0 %v975
      %1027 = vmatpush.bf16.msra.mxu0 %v971
      %1028 = vmatpush.bf16.msra.mxu0 %v967
      %1029 = vmatpush.bf16.msra.mxu0 %v963
      %1030 = vmatpush.bf16.msra.mxu0 %v959
      %1031 = vmatmul.bf16.gmra.mxu0 %v830
      %v1032 = vpop.f32.mrf.mxu0
      %v1033 = vadd.f32 0.0, %v1032
      %v1034 = vpop.f32.mrf.mxu0
      %v1035 = vadd.f32 0.0, %v1034
      %1036 = vdwg.mxu0
      %1037 = vmatpush.bf16.msra.mxu0 %v988
      %1038 = vmatpush.bf16.msra.mxu0 %v984
      %1039 = vmatpush.bf16.msra.mxu0 %v980
      %1040 = vmatpush.bf16.msra.mxu0 %v976
      %1041 = vmatpush.bf16.msra.mxu0 %v972
      %1042 = vmatpush.bf16.msra.mxu0 %v968
      %1043 = vmatpush.bf16.msra.mxu0 %v964
      %1044 = vmatpush.bf16.msra.mxu0 %v960
      %1045 = vmatmul.bf16.gmra.mxu0 %v830
      %v1046 = vpop.f32.mrf.mxu0
      %v1047 = vadd.f32 0.0, %v1046
      %v1048 = vpop.f32.mrf.mxu0
      %v1049 = vadd.f32 0.0, %v1048
      %1050 = vdwg.mxu0
      %1051 = vmatpush.bf16.msra.mxu0 %v989
      %1052 = vmatpush.bf16.msra.mxu0 %v985
      %1053 = vmatpush.bf16.msra.mxu0 %v981
      %1054 = vmatpush.bf16.msra.mxu0 %v977
      %1055 = vmatpush.bf16.msra.mxu0 %v973
      %1056 = vmatpush.bf16.msra.mxu0 %v969
      %1057 = vmatpush.bf16.msra.mxu0 %v965
      %1058 = vmatpush.bf16.msra.mxu0 %v961
      %1059 = vmatmul.bf16.gmra.mxu0 %v830
      %v1060 = vpop.f32.mrf.mxu0
      %v1061 = vadd.f32 0.0, %v1060
      %v1062 = vpop.f32.mrf.mxu0
      %v1063 = vadd.f32 0.0, %v1062
      %1064 = vdwg.mxu0
      %1065 = vmatpush.bf16.msra.mxu0 %v990
      %1066 = vmatpush.bf16.msra.mxu0 %v986
      %1067 = vmatpush.bf16.msra.mxu0 %v982
      %1068 = vmatpush.bf16.msra.mxu0 %v978
      %1069 = vmatpush.bf16.msra.mxu0 %v974
      %1070 = vmatpush.bf16.msra.mxu0 %v970
      %1071 = vmatpush.bf16.msra.mxu0 %v966
      %1072 = vmatpush.bf16.msra.mxu0 %v962
      %1073 = vmatmul.bf16.gmra.mxu0 %v830
      %v1074 = vpop.f32.mrf.mxu0
      %v1075 = vadd.f32 0.0, %v1074
      %v1076 = vpop.f32.mrf.mxu0
      %v1077 = vadd.f32 0.0, %v1076
      %1078 = vdwg.mxu0
      %vm1079 = vcmask 130048
      %v1080 = vsel %vm1079, %v679, 0
      %1082 = vmatpush.msra.mxu0 0.0
      %1083 = vmatpush.msra.mxu0 0.0
      %1084 = vmatpush.msra.mxu0 0.0
      %1085 = vmatpush.msra.mxu0 0.0
      %1086 = vmatpush.msra.mxu0 0.0
      %1087 = vmatpush.msra.mxu0 0.0
      %1088 = vmatpush.msra.mxu0 0.0
      %1089 = vmatpush.msra.mxu0 0.0
      %1090 = vmatpush.msra.mxu0 0.0
      %1091 = vmatpush.msra.mxu0 0.0
      %1092 = vmatpush.msra.mxu0 0.0
      %1093 = vmatpush.msra.mxu0 0.0
      %1094 = vmatpush.msra.mxu0 0.0
      %1095 = vmatpush.msra.mxu0 0.0
      %1096 = vmatpush.msra.mxu0 %v1049
      %1097 = vmatpush.msra.mxu0 %v1047
      %1098 = vmatmul.f32.gmra.mxu0 %v1080
      %v1099 = vpop.f32.mrf.mxu0
      %v1100 = vadd.f32 0.0, %v1099
      %1101 = vdwg.mxu0
      %v1102 = vsel %vm1079, %v671, 0
      %1104 = vmatpush.msra.mxu0 0.0
      %1105 = vmatpush.msra.mxu0 0.0
      %1106 = vmatpush.msra.mxu0 0.0
      %1107 = vmatpush.msra.mxu0 0.0
      %1108 = vmatpush.msra.mxu0 0.0
      %1109 = vmatpush.msra.mxu0 0.0
      %1110 = vmatpush.msra.mxu0 0.0
      %1111 = vmatpush.msra.mxu0 0.0
      %1112 = vmatpush.msra.mxu0 0.0
      %1113 = vmatpush.msra.mxu0 0.0
      %1114 = vmatpush.msra.mxu0 0.0
      %1115 = vmatpush.msra.mxu0 0.0
      %1116 = vmatpush.msra.mxu0 0.0
      %1117 = vmatpush.msra.mxu0 0.0
      %1118 = vmatpush.msra.mxu0 %v1035
      %1119 = vmatpush.msra.mxu0 %v1033
      %1120 = vmatmul.f32.gmra.mxu0 %v1102
      %v1121 = vpop.f32.mrf.mxu0
      %v1122 = vadd.f32 %v1100, %v1121
      %1123 = vdwg.mxu0
      %v1124 = vsel %vm1079, %v746, 0
      %1126 = vmatpush.msra.mxu0 0.0
      %1127 = vmatpush.msra.mxu0 0.0
      %1128 = vmatpush.msra.mxu0 0.0
      %1129 = vmatpush.msra.mxu0 0.0
      %1130 = vmatpush.msra.mxu0 0.0
      %1131 = vmatpush.msra.mxu0 0.0
      %1132 = vmatpush.msra.mxu0 0.0
      %1133 = vmatpush.msra.mxu0 0.0
      %1134 = vmatpush.msra.mxu0 0.0
      %1135 = vmatpush.msra.mxu0 0.0
      %1136 = vmatpush.msra.mxu0 0.0
      %1137 = vmatpush.msra.mxu0 0.0
      %1138 = vmatpush.msra.mxu0 0.0
      %1139 = vmatpush.msra.mxu0 0.0
      %1140 = vmatpush.msra.mxu0 %v1063
      %1141 = vmatpush.msra.mxu0 %v1061
      %1142 = vmatmul.f32.gmra.mxu0 %v1124
      %v1143 = vpop.f32.mrf.mxu0
      %v1144 = vadd.f32 0.0, %v1143
      %1145 = vdwg.mxu0
      %v1146 = vadd.f32 %v1122, %v1144
      %v1147 = vsel %vm1079, %v785, 0
      %1149 = vmatpush.msra.mxu0 0.0
      %1150 = vmatpush.msra.mxu0 0.0
      %1151 = vmatpush.msra.mxu0 0.0
      %1152 = vmatpush.msra.mxu0 0.0
      %1153 = vmatpush.msra.mxu0 0.0
      %1154 = vmatpush.msra.mxu0 0.0
      %1155 = vmatpush.msra.mxu0 0.0
      %1156 = vmatpush.msra.mxu0 0.0
      %1157 = vmatpush.msra.mxu0 0.0
      %1158 = vmatpush.msra.mxu0 0.0
      %1159 = vmatpush.msra.mxu0 0.0
      %1160 = vmatpush.msra.mxu0 0.0
      %1161 = vmatpush.msra.mxu0 0.0
      %1162 = vmatpush.msra.mxu0 0.0
      %1163 = vmatpush.msra.mxu0 %v1077
      %1164 = vmatpush.msra.mxu0 %v1075
      %1165 = vmatmul.f32.gmra.mxu0 %v1147
      %v1166 = vpop.f32.mrf.mxu0
      %v1167 = vadd.f32 0.0, %v1166
      %1168 = vdwg.mxu0
      %v1169 = vadd.f32 %v1146, %v1167
      %v1170 = vld [vmem:[%s7] sm:$0x1]
      %v1172 = vperm.slane %v1170, 0
      %v1174 = vadd.f32 %v1169, %v1172
      %vm1175 = vcmp.gt.f32.partialorder %v1174, 0.0
      %v1176 = vmul.f32 %v1174, 0.2
      %v1177 = vsel %vm1175, %v1174, %v1176
      %v1178 = vpack.c.bf16 %v1177, %v1177
      %v1179 = vld [vmem:[%s3] sm:$0xff]
      %v1180 = vld [vmem:[%s3 + $0x8] sm:$0xff]
      %v1181 = vld [vmem:[%s3 + $0x10] sm:$0xff]
      %v1182 = vld [vmem:[%s3 + $0x18] sm:$0xff]
      %v1183 = vld [vmem:[%s3 + $0x20] sm:$0xff]
      %v1184 = vld [vmem:[%s3 + $0x28] sm:$0xff]
      %v1185 = vld [vmem:[%s3 + $0x30] sm:$0xff]
      %v1186 = vld [vmem:[%s3 + $0x38] sm:$0xff]
      %v1187 = vld [vmem:[%s3 + $0x40] sm:$0xff]
      %v1188 = vld [vmem:[%s3 + $0x48] sm:$0xff]
      %v1189 = vld [vmem:[%s3 + $0x50] sm:$0xff]
      %v1190 = vld [vmem:[%s3 + $0x58] sm:$0xff]
      %v1191 = vld [vmem:[%s3 + $0x60] sm:$0xff]
      %v1192 = vld [vmem:[%s3 + $0x68] sm:$0xff]
      %v1193 = vld [vmem:[%s3 + $0x70] sm:$0xff]
      %v1194 = vld [vmem:[%s3 + $0x78] sm:$0xff]
      %v1195 = vld [vmem:[%s3 + $0x80] sm:$0xff]
      %v1196 = vld [vmem:[%s3 + $0x88] sm:$0xff]
      %v1197 = vld [vmem:[%s3 + $0x90] sm:$0xff]
      %v1198 = vld [vmem:[%s3 + $0x98] sm:$0xff]
      %v1199 = vld [vmem:[%s3 + $0xa0] sm:$0xff]
      %v1200 = vld [vmem:[%s3 + $0xa8] sm:$0xff]
      %v1201 = vld [vmem:[%s3 + $0xb0] sm:$0xff]
      %v1202 = vld [vmem:[%s3 + $0xb8] sm:$0xff]
      %v1203 = vld [vmem:[%s3 + $0xc0] sm:$0xff]
      %v1204 = vld [vmem:[%s3 + $0xc8] sm:$0xff]
      %v1205 = vld [vmem:[%s3 + $0xd0] sm:$0xff]
      %v1206 = vld [vmem:[%s3 + $0xd8] sm:$0xff]
      %v1207 = vld [vmem:[%s3 + $0xe0] sm:$0xff]
      %v1208 = vld [vmem:[%s3 + $0xe8] sm:$0xff]
      %v1209 = vld [vmem:[%s3 + $0xf0] sm:$0xff]
      %v1210 = vld [vmem:[%s3 + $0xf8] sm:$0xff]
      %v1243 = vunpack.c.l.b16 %v1179
      %v1244 = vunpack.c.h.b16 %v1179
      %v1245 = vunpack.c.l.b16 %v1180
      %v1246 = vunpack.c.h.b16 %v1180
      %v1247 = vunpack.c.l.b16 %v1181
      %v1248 = vunpack.c.h.b16 %v1181
      %v1249 = vunpack.c.l.b16 %v1182
      %v1250 = vunpack.c.h.b16 %v1182
      %v1251 = vunpack.c.l.b16 %v1183
      %v1252 = vunpack.c.h.b16 %v1183
      %v1253 = vunpack.c.l.b16 %v1184
      %v1254 = vunpack.c.h.b16 %v1184
      %v1255 = vunpack.c.l.b16 %v1185
      %v1256 = vunpack.c.h.b16 %v1185
      %v1257 = vunpack.c.l.b16 %v1186
      %v1258 = vunpack.c.h.b16 %v1186
      %v1259 = vunpack.c.l.b16 %v1187
      %v1260 = vunpack.c.h.b16 %v1187
      %v1261 = vunpack.c.l.b16 %v1188
      %v1262 = vunpack.c.h.b16 %v1188
      %v1263 = vunpack.c.l.b16 %v1189
      %v1264 = vunpack.c.h.b16 %v1189
      %v1265 = vunpack.c.l.b16 %v1190
      %v1266 = vunpack.c.h.b16 %v1190
      %v1267 = vunpack.c.l.b16 %v1191
      %v1268 = vunpack.c.h.b16 %v1191
      %v1269 = vunpack.c.l.b16 %v1192
      %v1270 = vunpack.c.h.b16 %v1192
      %v1271 = vunpack.c.l.b16 %v1193
      %v1272 = vunpack.c.h.b16 %v1193
      %v1273 = vunpack.c.l.b16 %v1194
      %v1274 = vunpack.c.h.b16 %v1194
      %v1275 = vunpack.c.l.b16 %v1195
      %v1276 = vunpack.c.h.b16 %v1195
      %v1277 = vunpack.c.l.b16 %v1196
      %v1278 = vunpack.c.h.b16 %v1196
      %v1279 = vunpack.c.l.b16 %v1197
      %v1280 = vunpack.c.h.b16 %v1197
      %v1281 = vunpack.c.l.b16 %v1198
      %v1282 = vunpack.c.h.b16 %v1198
      %v1283 = vunpack.c.l.b16 %v1199
      %v1284 = vunpack.c.h.b16 %v1199
      %v1285 = vunpack.c.l.b16 %v1200
      %v1286 = vunpack.c.h.b16 %v1200
      %v1287 = vunpack.c.l.b16 %v1201
      %v1288 = vunpack.c.h.b16 %v1201
      %v1289 = vunpack.c.l.b16 %v1202
      %v1290 = vunpack.c.h.b16 %v1202
      %v1291 = vunpack.c.l.b16 %v1203
      %v1292 = vunpack.c.h.b16 %v1203
      %v1293 = vunpack.c.l.b16 %v1204
      %v1294 = vunpack.c.h.b16 %v1204
      %v1295 = vunpack.c.l.b16 %v1205
      %v1296 = vunpack.c.h.b16 %v1205
      %v1297 = vunpack.c.l.b16 %v1206
      %v1298 = vunpack.c.h.b16 %v1206
      %v1299 = vunpack.c.l.b16 %v1207
      %v1300 = vunpack.c.h.b16 %v1207
      %v1301 = vunpack.c.l.b16 %v1208
      %v1302 = vunpack.c.h.b16 %v1208
      %v1303 = vunpack.c.l.b16 %v1209
      %v1304 = vunpack.c.h.b16 %v1209
      %v1305 = vunpack.c.l.b16 %v1210
      %v1306 = vunpack.c.h.b16 %v1210
      %v1307 = vpack.c.b16 %v1247, %v1243
      %v1308 = vpack.c.b16 %v1248, %v1244
      %v1309 = vpack.c.b16 %v1249, %v1245
      %v1310 = vpack.c.b16 %v1250, %v1246
      %v1311 = vpack.c.b16 %v1255, %v1251
      %v1312 = vpack.c.b16 %v1256, %v1252
      %v1313 = vpack.c.b16 %v1257, %v1253
      %v1314 = vpack.c.b16 %v1258, %v1254
      %v1315 = vpack.c.b16 %v1263, %v1259
      %v1316 = vpack.c.b16 %v1264, %v1260
      %v1317 = vpack.c.b16 %v1265, %v1261
      %v1318 = vpack.c.b16 %v1266, %v1262
      %v1319 = vpack.c.b16 %v1271, %v1267
      %v1320 = vpack.c.b16 %v1272, %v1268
      %v1321 = vpack.c.b16 %v1273, %v1269
      %v1322 = vpack.c.b16 %v1274, %v1270
      %v1323 = vpack.c.b16 %v1279, %v1275
      %v1324 = vpack.c.b16 %v1280, %v1276
      %v1325 = vpack.c.b16 %v1281, %v1277
      %v1326 = vpack.c.b16 %v1282, %v1278
      %v1327 = vpack.c.b16 %v1287, %v1283
      %v1328 = vpack.c.b16 %v1288, %v1284
      %v1329 = vpack.c.b16 %v1289, %v1285
      %v1330 = vpack.c.b16 %v1290, %v1286
      %v1331 = vpack.c.b16 %v1295, %v1291
      %v1332 = vpack.c.b16 %v1296, %v1292
      %v1333 = vpack.c.b16 %v1297, %v1293
      %v1334 = vpack.c.b16 %v1298, %v1294
      %v1335 = vpack.c.b16 %v1303, %v1299
      %v1336 = vpack.c.b16 %v1304, %v1300
      %v1337 = vpack.c.b16 %v1305, %v1301
      %v1338 = vpack.c.b16 %v1306, %v1302
      %1371 = vmatpush.bf16.msra.mxu0 %v1335
      %1372 = vmatpush.bf16.msra.mxu0 %v1331
      %1373 = vmatpush.bf16.msra.mxu0 %v1327
      %1374 = vmatpush.bf16.msra.mxu0 %v1323
      %1375 = vmatpush.bf16.msra.mxu0 %v1319
      %1376 = vmatpush.bf16.msra.mxu0 %v1315
      %1377 = vmatpush.bf16.msra.mxu0 %v1311
      %1378 = vmatpush.bf16.msra.mxu0 %v1307
      %1379 = vmatmul.bf16.gmra.mxu0 %v1178
      %v1380 = vpop.f32.mrf.mxu0
      %v1381 = vadd.f32 0.0, %v1380
      %v1382 = vpop.f32.mrf.mxu0
      %1383 = vdwg.mxu0
      %1384 = vmatpush.bf16.msra.mxu0 %v1336
      %1385 = vmatpush.bf16.msra.mxu0 %v1332
      %1386 = vmatpush.bf16.msra.mxu0 %v1328
      %1387 = vmatpush.bf16.msra.mxu0 %v1324
      %1388 = vmatpush.bf16.msra.mxu0 %v1320
      %1389 = vmatpush.bf16.msra.mxu0 %v1316
      %1390 = vmatpush.bf16.msra.mxu0 %v1312
      %1391 = vmatpush.bf16.msra.mxu0 %v1308
      %1392 = vmatmul.bf16.gmra.mxu0 %v1178
      %v1393 = vpop.f32.mrf.mxu0
      %v1394 = vadd.f32 0.0, %v1393
      %v1395 = vpop.f32.mrf.mxu0
      %1396 = vdwg.mxu0
      %1397 = vmatpush.bf16.msra.mxu0 %v1337
      %1398 = vmatpush.bf16.msra.mxu0 %v1333
      %1399 = vmatpush.bf16.msra.mxu0 %v1329
      %1400 = vmatpush.bf16.msra.mxu0 %v1325
      %1401 = vmatpush.bf16.msra.mxu0 %v1321
      %1402 = vmatpush.bf16.msra.mxu0 %v1317
      %1403 = vmatpush.bf16.msra.mxu0 %v1313
      %1404 = vmatpush.bf16.msra.mxu0 %v1309
      %1405 = vmatmul.bf16.gmra.mxu0 %v1178
      %v1406 = vpop.f32.mrf.mxu0
      %v1407 = vadd.f32 0.0, %v1406
      %v1408 = vpop.f32.mrf.mxu0
      %1409 = vdwg.mxu0
      %1410 = vmatpush.bf16.msra.mxu0 %v1338
      %1411 = vmatpush.bf16.msra.mxu0 %v1334
      %1412 = vmatpush.bf16.msra.mxu0 %v1330
      %1413 = vmatpush.bf16.msra.mxu0 %v1326
      %1414 = vmatpush.bf16.msra.mxu0 %v1322
      %1415 = vmatpush.bf16.msra.mxu0 %v1318
      %1416 = vmatpush.bf16.msra.mxu0 %v1314
      %1417 = vmatpush.bf16.msra.mxu0 %v1310
      %1418 = vmatmul.bf16.gmra.mxu0 %v1178
      %v1419 = vpop.f32.mrf.mxu0
      %v1420 = vadd.f32 0.0, %v1419
      %v1421 = vpop.f32.mrf.mxu0
      %1422 = vdwg.mxu0
      %vm1423 = vcmask 64512
      %v1424 = vsel %vm1423, %v679, 0
      %1426 = vmatpush.msra.mxu0 0.0
      %1427 = vmatpush.msra.mxu0 0.0
      %1428 = vmatpush.msra.mxu0 0.0
      %1429 = vmatpush.msra.mxu0 0.0
      %1430 = vmatpush.msra.mxu0 0.0
      %1431 = vmatpush.msra.mxu0 0.0
      %1432 = vmatpush.msra.mxu0 0.0
      %1433 = vmatpush.msra.mxu0 0.0
      %1434 = vmatpush.msra.mxu0 0.0
      %1435 = vmatpush.msra.mxu0 0.0
      %1436 = vmatpush.msra.mxu0 0.0
      %1437 = vmatpush.msra.mxu0 0.0
      %1438 = vmatpush.msra.mxu0 0.0
      %1439 = vmatpush.msra.mxu0 0.0
      %1440 = vmatpush.msra.mxu0 0.0
      %1441 = vmatpush.msra.mxu0 %v1394
      %1442 = vmatmul.f32.gmra.mxu0 %v1424
      %v1443 = vpop.f32.mrf.mxu0
      %v1444 = vadd.f32 0.0, %v1443
      %1445 = vdwg.mxu0
      %v1446 = vsel %vm1423, %v671, 0
      %1448 = vmatpush.msra.mxu0 0.0
      %1449 = vmatpush.msra.mxu0 0.0
      %1450 = vmatpush.msra.mxu0 0.0
      %1451 = vmatpush.msra.mxu0 0.0
      %1452 = vmatpush.msra.mxu0 0.0
      %1453 = vmatpush.msra.mxu0 0.0
      %1454 = vmatpush.msra.mxu0 0.0
      %1455 = vmatpush.msra.mxu0 0.0
      %1456 = vmatpush.msra.mxu0 0.0
      %1457 = vmatpush.msra.mxu0 0.0
      %1458 = vmatpush.msra.mxu0 0.0
      %1459 = vmatpush.msra.mxu0 0.0
      %1460 = vmatpush.msra.mxu0 0.0
      %1461 = vmatpush.msra.mxu0 0.0
      %1462 = vmatpush.msra.mxu0 0.0
      %1463 = vmatpush.msra.mxu0 %v1381
      %1464 = vmatmul.f32.gmra.mxu0 %v1446
      %v1465 = vpop.f32.mrf.mxu0
      %v1466 = vadd.f32 %v1444, %v1465
      %1467 = vdwg.mxu0
      %v1468 = vsel %vm1423, %v746, 0
      %1470 = vmatpush.msra.mxu0 0.0
      %1471 = vmatpush.msra.mxu0 0.0
      %1472 = vmatpush.msra.mxu0 0.0
      %1473 = vmatpush.msra.mxu0 0.0
      %1474 = vmatpush.msra.mxu0 0.0
      %1475 = vmatpush.msra.mxu0 0.0
      %1476 = vmatpush.msra.mxu0 0.0
      %1477 = vmatpush.msra.mxu0 0.0
      %1478 = vmatpush.msra.mxu0 0.0
      %1479 = vmatpush.msra.mxu0 0.0
      %1480 = vmatpush.msra.mxu0 0.0
      %1481 = vmatpush.msra.mxu0 0.0
      %1482 = vmatpush.msra.mxu0 0.0
      %1483 = vmatpush.msra.mxu0 0.0
      %1484 = vmatpush.msra.mxu0 0.0
      %1485 = vmatpush.msra.mxu0 %v1407
      %1486 = vmatmul.f32.gmra.mxu0 %v1468
      %v1487 = vpop.f32.mrf.mxu0
      %v1488 = vadd.f32 0.0, %v1487
      %1489 = vdwg.mxu0
      %v1490 = vadd.f32 %v1466, %v1488
      %v1491 = vsel %vm1423, %v785, 0
      %1493 = vmatpush.msra.mxu0 0.0
      %1494 = vmatpush.msra.mxu0 0.0
      %1495 = vmatpush.msra.mxu0 0.0
      %1496 = vmatpush.msra.mxu0 0.0
      %1497 = vmatpush.msra.mxu0 0.0
      %1498 = vmatpush.msra.mxu0 0.0
      %1499 = vmatpush.msra.mxu0 0.0
      %1500 = vmatpush.msra.mxu0 0.0
      %1501 = vmatpush.msra.mxu0 0.0
      %1502 = vmatpush.msra.mxu0 0.0
      %1503 = vmatpush.msra.mxu0 0.0
      %1504 = vmatpush.msra.mxu0 0.0
      %1505 = vmatpush.msra.mxu0 0.0
      %1506 = vmatpush.msra.mxu0 0.0
      %1507 = vmatpush.msra.mxu0 0.0
      %1508 = vmatpush.msra.mxu0 %v1420
      %1509 = vmatmul.f32.gmra.mxu0 %v1491
      %v1510 = vpop.f32.mrf.mxu0
      %v1511 = vadd.f32 0.0, %v1510
      %1512 = vdwg.mxu0
      %v1513 = vadd.f32 %v1490, %v1511
      %v1514 = vld [vmem:[%s8] sm:$0x1]
      %v1516 = vperm.slane %v1514, 0
      %v1518 = vadd.f32 %v1513, %v1516
      %vm1519 = vcmp.gt.f32.partialorder %v1518, 0.0
      %v1520 = vmul.f32 %v1518, 0.2
      %v1521 = vsel %vm1519, %v1518, %v1520
      %v1522 = vpack.c.bf16 %v1521, %v1521
      %v1523 = vld [vmem:[%s4] sm:$0xff]
      %v1524 = vld [vmem:[%s4 + $0x8] sm:$0xff]
      %v1525 = vld [vmem:[%s4 + $0x10] sm:$0xff]
      %v1526 = vld [vmem:[%s4 + $0x18] sm:$0xff]
      %v1527 = vld [vmem:[%s4 + $0x20] sm:$0xff]
      %v1528 = vld [vmem:[%s4 + $0x28] sm:$0xff]
      %v1529 = vld [vmem:[%s4 + $0x30] sm:$0xff]
      %v1530 = vld [vmem:[%s4 + $0x38] sm:$0xff]
      %v1531 = vld [vmem:[%s4 + $0x40] sm:$0xff]
      %v1532 = vld [vmem:[%s4 + $0x48] sm:$0xff]
      %v1533 = vld [vmem:[%s4 + $0x50] sm:$0xff]
      %v1534 = vld [vmem:[%s4 + $0x58] sm:$0xff]
      %v1535 = vld [vmem:[%s4 + $0x60] sm:$0xff]
      %v1536 = vld [vmem:[%s4 + $0x68] sm:$0xff]
      %v1537 = vld [vmem:[%s4 + $0x70] sm:$0xff]
      %v1538 = vld [vmem:[%s4 + $0x78] sm:$0xff]
      %v1539 = vld [vmem:[%s4 + $0x80] sm:$0xff]
      %v1540 = vld [vmem:[%s4 + $0x88] sm:$0xff]
      %v1541 = vld [vmem:[%s4 + $0x90] sm:$0xff]
      %v1542 = vld [vmem:[%s4 + $0x98] sm:$0xff]
      %v1543 = vld [vmem:[%s4 + $0xa0] sm:$0xff]
      %v1544 = vld [vmem:[%s4 + $0xa8] sm:$0xff]
      %v1545 = vld [vmem:[%s4 + $0xb0] sm:$0xff]
      %v1546 = vld [vmem:[%s4 + $0xb8] sm:$0xff]
      %v1547 = vld [vmem:[%s4 + $0xc0] sm:$0xff]
      %v1548 = vld [vmem:[%s4 + $0xc8] sm:$0xff]
      %v1549 = vld [vmem:[%s4 + $0xd0] sm:$0xff]
      %v1550 = vld [vmem:[%s4 + $0xd8] sm:$0xff]
      %v1551 = vld [vmem:[%s4 + $0xe0] sm:$0xff]
      %v1552 = vld [vmem:[%s4 + $0xe8] sm:$0xff]
      %v1553 = vld [vmem:[%s4 + $0xf0] sm:$0xff]
      %v1554 = vld [vmem:[%s4 + $0xf8] sm:$0xff]
      %v1587 = vunpack.c.l.b16 %v1523
      %v1588 = vunpack.c.h.b16 %v1523
      %v1589 = vunpack.c.l.b16 %v1524
      %v1590 = vunpack.c.h.b16 %v1524
      %v1591 = vunpack.c.l.b16 %v1525
      %v1592 = vunpack.c.h.b16 %v1525
      %v1593 = vunpack.c.l.b16 %v1526
      %v1594 = vunpack.c.h.b16 %v1526
      %v1595 = vunpack.c.l.b16 %v1527
      %v1596 = vunpack.c.h.b16 %v1527
      %v1597 = vunpack.c.l.b16 %v1528
      %v1598 = vunpack.c.h.b16 %v1528
      %v1599 = vunpack.c.l.b16 %v1529
      %v1600 = vunpack.c.h.b16 %v1529
      %v1601 = vunpack.c.l.b16 %v1530
      %v1602 = vunpack.c.h.b16 %v1530
      %v1603 = vunpack.c.l.b16 %v1531
      %v1604 = vunpack.c.h.b16 %v1531
      %v1605 = vunpack.c.l.b16 %v1532
      %v1606 = vunpack.c.h.b16 %v1532
      %v1607 = vunpack.c.l.b16 %v1533
      %v1608 = vunpack.c.h.b16 %v1533
      %v1609 = vunpack.c.l.b16 %v1534
      %v1610 = vunpack.c.h.b16 %v1534
      %v1611 = vunpack.c.l.b16 %v1535
      %v1612 = vunpack.c.h.b16 %v1535
      %v1613 = vunpack.c.l.b16 %v1536
      %v1614 = vunpack.c.h.b16 %v1536
      %v1615 = vunpack.c.l.b16 %v1537
      %v1616 = vunpack.c.h.b16 %v1537
      %v1617 = vunpack.c.l.b16 %v1538
      %v1618 = vunpack.c.h.b16 %v1538
      %v1619 = vunpack.c.l.b16 %v1539
      %v1620 = vunpack.c.h.b16 %v1539
      %v1621 = vunpack.c.l.b16 %v1540
      %v1622 = vunpack.c.h.b16 %v1540
      %v1623 = vunpack.c.l.b16 %v1541
      %v1624 = vunpack.c.h.b16 %v1541
      %v1625 = vunpack.c.l.b16 %v1542
      %v1626 = vunpack.c.h.b16 %v1542
      %v1627 = vunpack.c.l.b16 %v1543
      %v1628 = vunpack.c.h.b16 %v1543
      %v1629 = vunpack.c.l.b16 %v1544
      %v1630 = vunpack.c.h.b16 %v1544
      %v1631 = vunpack.c.l.b16 %v1545
      %v1632 = vunpack.c.h.b16 %v1545
      %v1633 = vunpack.c.l.b16 %v1546
      %v1634 = vunpack.c.h.b16 %v1546
      %v1635 = vunpack.c.l.b16 %v1547
      %v1636 = vunpack.c.h.b16 %v1547
      %v1637 = vunpack.c.l.b16 %v1548
      %v1638 = vunpack.c.h.b16 %v1548
      %v1639 = vunpack.c.l.b16 %v1549
      %v1640 = vunpack.c.h.b16 %v1549
      %v1641 = vunpack.c.l.b16 %v1550
      %v1642 = vunpack.c.h.b16 %v1550
      %v1643 = vunpack.c.l.b16 %v1551
      %v1644 = vunpack.c.h.b16 %v1551
      %v1645 = vunpack.c.l.b16 %v1552
      %v1646 = vunpack.c.h.b16 %v1552
      %v1647 = vunpack.c.l.b16 %v1553
      %v1648 = vunpack.c.h.b16 %v1553
      %v1649 = vunpack.c.l.b16 %v1554
      %v1650 = vunpack.c.h.b16 %v1554
      %v1651 = vpack.c.b16 %v1591, %v1587
      %v1652 = vpack.c.b16 %v1592, %v1588
      %v1653 = vpack.c.b16 %v1593, %v1589
      %v1654 = vpack.c.b16 %v1594, %v1590
      %v1655 = vpack.c.b16 %v1599, %v1595
      %v1656 = vpack.c.b16 %v1600, %v1596
      %v1657 = vpack.c.b16 %v1601, %v1597
      %v1658 = vpack.c.b16 %v1602, %v1598
      %v1659 = vpack.c.b16 %v1607, %v1603
      %v1660 = vpack.c.b16 %v1608, %v1604
      %v1661 = vpack.c.b16 %v1609, %v1605
      %v1662 = vpack.c.b16 %v1610, %v1606
      %v1663 = vpack.c.b16 %v1615, %v1611
      %v1664 = vpack.c.b16 %v1616, %v1612
      %v1665 = vpack.c.b16 %v1617, %v1613
      %v1666 = vpack.c.b16 %v1618, %v1614
      %v1667 = vpack.c.b16 %v1623, %v1619
      %v1668 = vpack.c.b16 %v1624, %v1620
      %v1669 = vpack.c.b16 %v1625, %v1621
      %v1670 = vpack.c.b16 %v1626, %v1622
      %v1671 = vpack.c.b16 %v1631, %v1627
      %v1672 = vpack.c.b16 %v1632, %v1628
      %v1673 = vpack.c.b16 %v1633, %v1629
      %v1674 = vpack.c.b16 %v1634, %v1630
      %v1675 = vpack.c.b16 %v1639, %v1635
      %v1676 = vpack.c.b16 %v1640, %v1636
      %v1677 = vpack.c.b16 %v1641, %v1637
      %v1678 = vpack.c.b16 %v1642, %v1638
      %v1679 = vpack.c.b16 %v1647, %v1643
      %v1680 = vpack.c.b16 %v1648, %v1644
      %v1681 = vpack.c.b16 %v1649, %v1645
      %v1682 = vpack.c.b16 %v1650, %v1646
      %1715 = vmatpush.bf16.msra.mxu0 %v1679
      %1716 = vmatpush.bf16.msra.mxu0 %v1675
      %1717 = vmatpush.bf16.msra.mxu0 %v1671
      %1718 = vmatpush.bf16.msra.mxu0 %v1667
      %1719 = vmatpush.bf16.msra.mxu0 %v1663
      %1720 = vmatpush.bf16.msra.mxu0 %v1659
      %1721 = vmatpush.bf16.msra.mxu0 %v1655
      %1722 = vmatpush.bf16.msra.mxu0 %v1651
      %1723 = vmatmul.bf16.gmra.mxu0 %v1522
      %v1724 = vpop.f32.mrf.mxu0
      %v1725 = vadd.f32 0.0, %v1724
      %v1726 = vpop.f32.mrf.mxu0
      %1727 = vdwg.mxu0
      %1728 = vmatpush.bf16.msra.mxu0 %v1680
      %1729 = vmatpush.bf16.msra.mxu0 %v1676
      %1730 = vmatpush.bf16.msra.mxu0 %v1672
      %1731 = vmatpush.bf16.msra.mxu0 %v1668
      %1732 = vmatpush.bf16.msra.mxu0 %v1664
      %1733 = vmatpush.bf16.msra.mxu0 %v1660
      %1734 = vmatpush.bf16.msra.mxu0 %v1656
      %1735 = vmatpush.bf16.msra.mxu0 %v1652
      %1736 = vmatmul.bf16.gmra.mxu0 %v1522
      %v1737 = vpop.f32.mrf.mxu0
      %v1738 = vadd.f32 0.0, %v1737
      %v1739 = vpop.f32.mrf.mxu0
      %1740 = vdwg.mxu0
      %1741 = vmatpush.bf16.msra.mxu0 %v1681
      %1742 = vmatpush.bf16.msra.mxu0 %v1677
      %1743 = vmatpush.bf16.msra.mxu0 %v1673
      %1744 = vmatpush.bf16.msra.mxu0 %v1669
      %1745 = vmatpush.bf16.msra.mxu0 %v1665
      %1746 = vmatpush.bf16.msra.mxu0 %v1661
      %1747 = vmatpush.bf16.msra.mxu0 %v1657
      %1748 = vmatpush.bf16.msra.mxu0 %v1653
      %1749 = vmatmul.bf16.gmra.mxu0 %v1522
      %v1750 = vpop.f32.mrf.mxu0
      %v1751 = vadd.f32 0.0, %v1750
      %v1752 = vpop.f32.mrf.mxu0
      %1753 = vdwg.mxu0
      %1754 = vmatpush.bf16.msra.mxu0 %v1682
      %1755 = vmatpush.bf16.msra.mxu0 %v1678
      %1756 = vmatpush.bf16.msra.mxu0 %v1674
      %1757 = vmatpush.bf16.msra.mxu0 %v1670
      %1758 = vmatpush.bf16.msra.mxu0 %v1666
      %1759 = vmatpush.bf16.msra.mxu0 %v1662
      %1760 = vmatpush.bf16.msra.mxu0 %v1658
      %1761 = vmatpush.bf16.msra.mxu0 %v1654
      %1762 = vmatmul.bf16.gmra.mxu0 %v1522
      %v1763 = vpop.f32.mrf.mxu0
      %v1764 = vadd.f32 0.0, %v1763
      %v1765 = vpop.f32.mrf.mxu0
      %1766 = vdwg.mxu0
      %vm1767 = vcmask 31744
      %v1768 = vsel %vm1767, %v679, 0
      %vm1770 = vcmask 1043456
      %v1772 = vsel %vm1770, %v1738, 0
      %1774 = vmatpush.msra.mxu0 0.0
      %1775 = vmatpush.msra.mxu0 0.0
      %1776 = vmatpush.msra.mxu0 0.0
      %1777 = vmatpush.msra.mxu0 0.0
      %1778 = vmatpush.msra.mxu0 0.0
      %1779 = vmatpush.msra.mxu0 0.0
      %1780 = vmatpush.msra.mxu0 0.0
      %1781 = vmatpush.msra.mxu0 0.0
      %1782 = vmatpush.msra.mxu0 0.0
      %1783 = vmatpush.msra.mxu0 0.0
      %1784 = vmatpush.msra.mxu0 0.0
      %1785 = vmatpush.msra.mxu0 0.0
      %1786 = vmatpush.msra.mxu0 0.0
      %1787 = vmatpush.msra.mxu0 0.0
      %1788 = vmatpush.msra.mxu0 0.0
      %1789 = vmatpush.msra.mxu0 %v1772
      %1790 = vmatmul.f32.gmra.mxu0 %v1768
      %v1791 = vpop.f32.mrf.mxu0
      %v1792 = vadd.f32 0.0, %v1791
      %1793 = vdwg.mxu0
      %v1794 = vsel %vm1767, %v671, 0
      %v1797 = vsel %vm1770, %v1725, 0
      %1799 = vmatpush.msra.mxu0 0.0
      %1800 = vmatpush.msra.mxu0 0.0
      %1801 = vmatpush.msra.mxu0 0.0
      %1802 = vmatpush.msra.mxu0 0.0
      %1803 = vmatpush.msra.mxu0 0.0
      %1804 = vmatpush.msra.mxu0 0.0
      %1805 = vmatpush.msra.mxu0 0.0
      %1806 = vmatpush.msra.mxu0 0.0
      %1807 = vmatpush.msra.mxu0 0.0
      %1808 = vmatpush.msra.mxu0 0.0
      %1809 = vmatpush.msra.mxu0 0.0
      %1810 = vmatpush.msra.mxu0 0.0
      %1811 = vmatpush.msra.mxu0 0.0
      %1812 = vmatpush.msra.mxu0 0.0
      %1813 = vmatpush.msra.mxu0 0.0
      %1814 = vmatpush.msra.mxu0 %v1797
      %1815 = vmatmul.f32.gmra.mxu0 %v1794
      %v1816 = vpop.f32.mrf.mxu0
      %v1817 = vadd.f32 %v1792, %v1816
      %1818 = vdwg.mxu0
      %v1819 = vsel %vm1767, %v746, 0
      %v1822 = vsel %vm1770, %v1751, 0
      %1824 = vmatpush.msra.mxu0 0.0
      %1825 = vmatpush.msra.mxu0 0.0
      %1826 = vmatpush.msra.mxu0 0.0
      %1827 = vmatpush.msra.mxu0 0.0
      %1828 = vmatpush.msra.mxu0 0.0
      %1829 = vmatpush.msra.mxu0 0.0
      %1830 = vmatpush.msra.mxu0 0.0
      %1831 = vmatpush.msra.mxu0 0.0
      %1832 = vmatpush.msra.mxu0 0.0
      %1833 = vmatpush.msra.mxu0 0.0
      %1834 = vmatpush.msra.mxu0 0.0
      %1835 = vmatpush.msra.mxu0 0.0
      %1836 = vmatpush.msra.mxu0 0.0
      %1837 = vmatpush.msra.mxu0 0.0
      %1838 = vmatpush.msra.mxu0 0.0
      %1839 = vmatpush.msra.mxu0 %v1822
      %1840 = vmatmul.f32.gmra.mxu0 %v1819
      %v1841 = vpop.f32.mrf.mxu0
      %v1842 = vadd.f32 0.0, %v1841
      %1843 = vdwg.mxu0
      %v1844 = vadd.f32 %v1817, %v1842
      %v1845 = vsel %vm1767, %v785, 0
      %v1848 = vsel %vm1770, %v1764, 0
      %1850 = vmatpush.msra.mxu0 0.0
      %1851 = vmatpush.msra.mxu0 0.0
      %1852 = vmatpush.msra.mxu0 0.0
      %1853 = vmatpush.msra.mxu0 0.0
      %1854 = vmatpush.msra.mxu0 0.0
      %1855 = vmatpush.msra.mxu0 0.0
      %1856 = vmatpush.msra.mxu0 0.0
      %1857 = vmatpush.msra.mxu0 0.0
      %1858 = vmatpush.msra.mxu0 0.0
      %1859 = vmatpush.msra.mxu0 0.0
      %1860 = vmatpush.msra.mxu0 0.0
      %1861 = vmatpush.msra.mxu0 0.0
      %1862 = vmatpush.msra.mxu0 0.0
      %1863 = vmatpush.msra.mxu0 0.0
      %1864 = vmatpush.msra.mxu0 0.0
      %1865 = vmatpush.msra.mxu0 %v1848
      %1866 = vmatmul.f32.gmra.mxu0 %v1845
      %v1867 = vpop.f32.mrf.mxu0
      %v1868 = vadd.f32 0.0, %v1867
      %1869 = vdwg.mxu0
      %v1870 = vadd.f32 %v1844, %v1868
      %v1871 = vld [vmem:[%s9] sm:$0x1]
      %v1873 = vperm.slane %v1871, 0
      %v1875 = vadd.f32 %v1870, %v1873
      %vm1876 = vcmp.gt.f32.partialorder %v1875, 0.0
      %v1877 = vmul.f32 %v1875, 0.2
      %v1878 = vsel %vm1876, %v1875, %v1877
      %v1879 = vpack.c.bf16 %v1878, %v1878
      %v1880 = vld [vmem:[%s5] sm:$0xf]
      %v1881 = vld [vmem:[%s5 + $0x4] sm:$0xf]
      %v1882 = vld [vmem:[%s5 + $0x8] sm:$0xf]
      %v1883 = vld [vmem:[%s5 + $0xc] sm:$0xf]
      %v1884 = vld [vmem:[%s5 + $0x10] sm:$0xf]
      %v1885 = vld [vmem:[%s5 + $0x14] sm:$0xf]
      %v1886 = vld [vmem:[%s5 + $0x18] sm:$0xf]
      %v1887 = vld [vmem:[%s5 + $0x1c] sm:$0xf]
      %v1888 = vld [vmem:[%s5 + $0x20] sm:$0xf]
      %v1889 = vld [vmem:[%s5 + $0x24] sm:$0xf]
      %v1890 = vld [vmem:[%s5 + $0x28] sm:$0xf]
      %v1891 = vld [vmem:[%s5 + $0x2c] sm:$0xf]
      %v1892 = vld [vmem:[%s5 + $0x30] sm:$0xf]
      %v1893 = vld [vmem:[%s5 + $0x34] sm:$0xf]
      %v1894 = vld [vmem:[%s5 + $0x38] sm:$0xf]
      %v1895 = vld [vmem:[%s5 + $0x3c] sm:$0xf]
      %v1912 = vunpack.c.l.b16 %v1880
      %v1913 = vunpack.c.l.b16 %v1881
      %v1914 = vunpack.c.l.b16 %v1882
      %v1915 = vunpack.c.l.b16 %v1883
      %v1916 = vunpack.c.l.b16 %v1884
      %v1917 = vunpack.c.l.b16 %v1885
      %v1918 = vunpack.c.l.b16 %v1886
      %v1919 = vunpack.c.l.b16 %v1887
      %v1920 = vunpack.c.l.b16 %v1888
      %v1921 = vunpack.c.l.b16 %v1889
      %v1922 = vunpack.c.l.b16 %v1890
      %v1923 = vunpack.c.l.b16 %v1891
      %v1924 = vunpack.c.l.b16 %v1892
      %v1925 = vunpack.c.l.b16 %v1893
      %v1926 = vunpack.c.l.b16 %v1894
      %v1927 = vunpack.c.l.b16 %v1895
      %v1928 = vpack.c.b16 %v1913, %v1912
      %v1929 = vpack.c.b16 %v1915, %v1914
      %v1930 = vpack.c.b16 %v1917, %v1916
      %v1931 = vpack.c.b16 %v1919, %v1918
      %v1932 = vpack.c.b16 %v1921, %v1920
      %v1933 = vpack.c.b16 %v1923, %v1922
      %v1934 = vpack.c.b16 %v1925, %v1924
      %v1935 = vpack.c.b16 %v1927, %v1926
      %1944 = vmatpush.bf16.msra.mxu0 %v1935
      %1945 = vmatpush.bf16.msra.mxu0 %v1934
      %1946 = vmatpush.bf16.msra.mxu0 %v1933
      %1947 = vmatpush.bf16.msra.mxu0 %v1932
      %1948 = vmatpush.bf16.msra.mxu0 %v1931
      %1949 = vmatpush.bf16.msra.mxu0 %v1930
      %1950 = vmatpush.bf16.msra.mxu0 %v1929
      %1951 = vmatpush.bf16.msra.mxu0 %v1928
      %1952 = vmatmul.bf16.gmra.mxu0 %v1879
      %v1953 = vpop.f32.mrf.mxu0
      %v1954 = vadd.f32 0.0, %v1953
      %v1955 = vpop.f32.mrf.mxu0
      %1956 = vdwg.mxu0
      %1958 = vrot.lane.b32.xlu0 %v1954, 127
      %v1959 = vpop.permute.xlu0 %1958
      %vm1960 = vcmask 15360
      %v1961 = vsel %vm1960, %v679, 0
      %vm1963 = vcmask 1041408
      %v1964 = vsel %vm1963, %v1959, 0
      %1966 = vmatpush.msra.mxu0 0.0
      %1967 = vmatpush.msra.mxu0 0.0
      %1968 = vmatpush.msra.mxu0 0.0
      %1969 = vmatpush.msra.mxu0 0.0
      %1970 = vmatpush.msra.mxu0 0.0
      %1971 = vmatpush.msra.mxu0 0.0
      %1972 = vmatpush.msra.mxu0 0.0
      %1973 = vmatpush.msra.mxu0 0.0
      %1974 = vmatpush.msra.mxu0 0.0
      %1975 = vmatpush.msra.mxu0 0.0
      %1976 = vmatpush.msra.mxu0 0.0
      %1977 = vmatpush.msra.mxu0 0.0
      %1978 = vmatpush.msra.mxu0 0.0
      %1979 = vmatpush.msra.mxu0 0.0
      %1980 = vmatpush.msra.mxu0 0.0
      %1981 = vmatpush.msra.mxu0 %v1964
      %1982 = vmatmul.f32.gmra.mxu0 %v1961
      %v1983 = vpop.f32.mrf.mxu0
      %v1984 = vadd.f32 0.0, %v1983
      %1985 = vdwg.mxu0
      %v1986 = vsel %vm1960, %v671, 0
      %v1988 = vsel %vm1963, %v1954, 0
      %1990 = vmatpush.msra.mxu0 0.0
      %1991 = vmatpush.msra.mxu0 0.0
      %1992 = vmatpush.msra.mxu0 0.0
      %1993 = vmatpush.msra.mxu0 0.0
      %1994 = vmatpush.msra.mxu0 0.0
      %1995 = vmatpush.msra.mxu0 0.0
      %1996 = vmatpush.msra.mxu0 0.0
      %1997 = vmatpush.msra.mxu0 0.0
      %1998 = vmatpush.msra.mxu0 0.0
      %1999 = vmatpush.msra.mxu0 0.0
      %2000 = vmatpush.msra.mxu0 0.0
      %2001 = vmatpush.msra.mxu0 0.0
      %2002 = vmatpush.msra.mxu0 0.0
      %2003 = vmatpush.msra.mxu0 0.0
      %2004 = vmatpush.msra.mxu0 0.0
      %2005 = vmatpush.msra.mxu0 %v1988
      %2006 = vmatmul.f32.gmra.mxu0 %v1986
      %v2007 = vpop.f32.mrf.mxu0
      %v2008 = vadd.f32 %v1984, %v2007
      %2009 = vdwg.mxu0
      %2010 = vrot.lane.b32.xlu0 %v1954, 126
      %v2011 = vpop.permute.xlu0 %2010
      %v2012 = vsel %vm1960, %v746, 0
      %v2014 = vsel %vm1963, %v2011, 0
      %2016 = vmatpush.msra.mxu0 0.0
      %2017 = vmatpush.msra.mxu0 0.0
      %2018 = vmatpush.msra.mxu0 0.0
      %2019 = vmatpush.msra.mxu0 0.0
      %2020 = vmatpush.msra.mxu0 0.0
      %2021 = vmatpush.msra.mxu0 0.0
      %2022 = vmatpush.msra.mxu0 0.0
      %2023 = vmatpush.msra.mxu0 0.0
      %2024 = vmatpush.msra.mxu0 0.0
      %2025 = vmatpush.msra.mxu0 0.0
      %2026 = vmatpush.msra.mxu0 0.0
      %2027 = vmatpush.msra.mxu0 0.0
      %2028 = vmatpush.msra.mxu0 0.0
      %2029 = vmatpush.msra.mxu0 0.0
      %2030 = vmatpush.msra.mxu0 0.0
      %2031 = vmatpush.msra.mxu0 %v2014
      %2032 = vmatmul.f32.gmra.mxu0 %v2012
      %v2033 = vpop.f32.mrf.mxu0
      %v2034 = vadd.f32 0.0, %v2033
      %2035 = vdwg.mxu0
      %v2036 = vadd.f32 %v2008, %v2034
      %2037 = vrot.lane.b32.xlu0 %v1954, 125
      %v2038 = vpop.permute.xlu0 %2037
      %v2039 = vsel %vm1960, %v785, 0
      %v2041 = vsel %vm1963, %v2038, 0
      %2043 = vmatpush.msra.mxu0 0.0
      %2044 = vmatpush.msra.mxu0 0.0
      %2045 = vmatpush.msra.mxu0 0.0
      %2046 = vmatpush.msra.mxu0 0.0
      %2047 = vmatpush.msra.mxu0 0.0
      %2048 = vmatpush.msra.mxu0 0.0
      %2049 = vmatpush.msra.mxu0 0.0
      %2050 = vmatpush.msra.mxu0 0.0
      %2051 = vmatpush.msra.mxu0 0.0
      %2052 = vmatpush.msra.mxu0 0.0
      %2053 = vmatpush.msra.mxu0 0.0
      %2054 = vmatpush.msra.mxu0 0.0
      %2055 = vmatpush.msra.mxu0 0.0
      %2056 = vmatpush.msra.mxu0 0.0
      %2057 = vmatpush.msra.mxu0 0.0
      %2058 = vmatpush.msra.mxu0 %v2041
      %2059 = vmatmul.f32.gmra.mxu0 %v2039
      %v2060 = vpop.f32.mrf.mxu0
      %v2061 = vadd.f32 0.0, %v2060
      %2062 = vdwg.mxu0
      %v2063 = vadd.f32 %v2036, %v2061
      %v2064 = vld [vmem:[#allocation2] sm:$0x1]
      %v2065 = vadd.f32 %v2063, %v2064
      %vm2066 = vcmask 0
      %2067 = vst.msk [vmem:[%s384] sm:$0x1] %vm2066, %v2065
      %p2068 = scmp.lt.s32.totalorder %s24, 1
      %s2069 = scalar_select %p2068, %s24, 1
      %s2070 = scalar_lea.vmem %s11, %s2069
      // Predicated region
      $region65: #{fc_discriminator.1} parent=63 // pred_check
        %p2071 = pneg %p278
      $region66: #{fc_discriminator.1} parent=63 // pred_check_branch
        %2073 = sbr.rel (%p2071) target = $region68
      $region67: #{fc_discriminator.1} parent=63 // pred_region
        _
      $region68: #{fc_discriminator.1} parent=63 // pred_fallthru
        _
    $region64: #{fc_discriminator.1} parent=5 // pred_fallthru
      _
    %p2074 = scmp.le.s32.totalorder 2, %s19
    // Predicated region
    $region69: #{fc_discriminator.1} parent=5 // pred_check
      %p2075 = pneg %p2074
    $region70: #{fc_discriminator.1} parent=5 // pred_check_branch
      %2077 = sbr.rel (%p2075) target = $region72
    $region71: #{fc_discriminator.1} parent=5 // pred_region
      %s2078 = ssub.s32 %s19, 2
      // Predicated region
      $region73: #{fc_discriminator.1} parent=71 // pred_check
        %p2079 = pneg %p284
      $region74: #{fc_discriminator.1} parent=71 // pred_check_branch
        %2081 = sbr.rel (%p2079) target = $region76
      $region75: #{fc_discriminator.1} parent=71 // pred_region
        %p2082 = scmp.lt.s32.totalorder %s25, 1
        %s2083 = scalar_select %p2082, %s25, 1
        %s2084 = scalar_lea.vmem %s11, %s2083
      $region76: #{fc_discriminator.1} parent=71 // pred_fallthru
        _
    $region72: #{fc_discriminator.1} parent=5 // pred_fallthru
      _
  $region6: #{fc_discriminator.1} parent=0 // loop_footer
    %s23 = sadd.s32 1, %s19
  $region7: #{fc_discriminator.1} parent=0 // loop_footer_branch
    %18 = sbr.rel target = $region3
  $region8: #{fc_discriminator.1} parent=0 // loop_exit
    _

</llo_original>
